<compile_context>
chip_gen: v7x
topology: tpu7x:2x2x1
jax: 0.10.0
libtpu: 0.0.40
codegen_flags: <defaults>
</compile_context>

<pallas_src>
import numpy as np
import jax
import jax.numpy as jnp
from jax import lax
from jax.experimental import pallas as pl
from jax.experimental.pallas import tpu as pltpu

K_NEIGHBOR = 3
NEG_SLOPE = 0.1

IN_W = 16        # packed per-row input: cols 0:2 vel, col 7 = 1/count weight, cols 8:8+K dist
C_PAD = 128      # lane-dense padded class dimension
NEG_BIG = -1e30  # bias for padded class columns -> softmax mass ~ 0

# bf16 weight slab row offsets (all multiples of 16 -> aligned bf16 sublane tiles)
W1_R, W2_R, WC1_R, WC2_R, WC3_R = 0, 16, 48, 112, 176
W_ROWS = 208
# f32 bias slab rows
B1_R, B2_R, BC1_R, BC2_R, BC3_R = 0, 1, 2, 3, 4
B_ROWS = 8


def _round_up(x, m):
    return ((x + m - 1) // m) * m


def _leaky(x):
    return jnp.where(x > 0, x, NEG_SLOPE * x)


# ------------------------------- kernel -------------------------------

def _make_kernel(s_tile, a_blk):
    """One grid step = s_tile samples x a_blk agent slots = s_tile*a_blk rows."""
    r = s_tile * a_blk

    def kernel(x_ref, w_ref, b_ref, y_ref):
        f32, bf16 = jnp.float32, jnp.bfloat16

        # (a_blk, s_tile, 16) -> (R, 16): pure leading-dim collapse (s_tile % 8 == 0).
        x = x_ref[...].reshape(r, IN_W)

        # dist cols (8:16): exp(-d/5) == exp(d * -0.2); vel/weight cols untouched.
        # Zero the non-dist cols before exp so no discarded inf is ever produced.
        col = lax.broadcasted_iota(jnp.int32, x.shape, 1)
        is_vel = col < 8
        xin = jnp.where(is_vel, x, jnp.exp(jnp.where(is_vel, 0.0, x) * (-0.2)))

        # Fused block-diagonal embedding MLP (vel-MLP | dist-MLP in one matmul pair).
        # bf16 weights/activations, f32 accumulation, f32 biases.
        h1 = _leaky(jnp.dot(xin.astype(bf16), w_ref[W1_R:W1_R + 16, 0:32],
                            preferred_element_type=f32) + b_ref[B1_R:B1_R + 1, 0:32])
        rows = _leaky(jnp.dot(h1.astype(bf16), w_ref[W2_R:W2_R + 32, 0:64],
                              preferred_element_type=f32) + b_ref[B2_R:B2_R + 1, 0:64])  # (R,64)=[V|D]

        # Exact per-sample mean pooling on the VPU: per-row weight (1/count, 0 for padding)
        # rides in x[:, 7].  Leading-dim reshape (no data movement) + tree reduction over
        # agent slots -> log(a_blk) critical path instead of a serial add chain.
        rows_w = rows * x[:, 7:8]
        pooled = jnp.sum(rows_w.reshape(a_blk, s_tile, 64), axis=0)          # (s_tile, 64)

        # Classifier MLP (weights resident in the VMEM slabs).
        h3 = _leaky(jnp.dot(pooled.astype(bf16), w_ref[WC1_R:WC1_R + 64, 0:64],
                            preferred_element_type=f32) + b_ref[BC1_R:BC1_R + 1, 0:64])
        h4 = _leaky(jnp.dot(h3.astype(bf16), w_ref[WC2_R:WC2_R + 64, 0:32],
                            preferred_element_type=f32) + b_ref[BC2_R:BC2_R + 1, 0:32])
        logits = jnp.dot(h4.astype(bf16), w_ref[WC3_R:WC3_R + 32, :],
                         preferred_element_type=f32) + b_ref[BC3_R:BC3_R + 1, :]        # (s_tile,128)

        # Numerically stable softmax over the lane-dense padded class axis.
        m = jnp.max(logits, axis=-1, keepdims=True)
        e = jnp.exp(logits - m)
        inv = pl.reciprocal(jnp.sum(e, axis=-1, keepdims=True), approx=True)   # EUP slot
        y_ref[...] = (e * inv).astype(y_ref.dtype)

    return kernel


def choose_s_tile(n_samples, a_blk, *, target_rows=4096, min_steps=8, max_s_tile=1024):
    """Pick the per-step sample-tile size.

    Targets ~target_rows agent rows per grid step (so the ~600-cycle per-step pipeline
    overhead and MXU drain are amortised) while keeping at least ~min_steps grid steps
    so the 'parallel' axis shards evenly across v7x's two TensorCores.  With the default
    target, the lane-padded (a_blk, s_tile, 128) f32 input block is ~2 MiB per buffer
    (4 MiB double-buffered) -- comfortably inside the 32 MiB scoped VMEM on all of
    v5e/v6e/v7x even with the intermediates and the ~60 KiB resident parameter slabs.
    """
    by_rows = max(16, (target_rows // max(a_blk, 1)) // 16 * 16)
    by_steps = _round_up(max(1, -(-n_samples // min_steps)), 16)
    return max(16, min(by_rows, by_steps, max_s_tile))


def crowd_classifier_forward(x3, w_slab, b_slab, *, s_tile):
    """x3: (a_blk, s_pad, 16) packed rows; w_slab: (208,128) bf16; b_slab: (8,128) f32."""
    a_blk, s_pad, in_w = x3.shape
    assert in_w == IN_W
    assert s_tile % 16 == 0, "s_tile must be a multiple of 16 (bf16 output sublane tile)"
    assert s_pad % s_tile == 0, "padded sample count must be a multiple of s_tile"
    assert w_slab.shape == (W_ROWS, C_PAD) and b_slab.shape == (B_ROWS, C_PAD)

    grid = (s_pad // s_tile,)
    return pl.pallas_call(
        _make_kernel(s_tile, a_blk),
        out_shape=jax.ShapeDtypeStruct((s_pad, C_PAD), jnp.bfloat16),
        grid=grid,
        in_specs=[
            # streamed sample tiles (all agent slots of s_tile samples per step)
            pl.BlockSpec((a_blk, s_tile, IN_W), lambda t: (0, t, 0)),
            # resident parameter slabs: constant block index -> DMA'd once, reused.
            pl.BlockSpec((W_ROWS, C_PAD), lambda t: (0, 0)),
            pl.BlockSpec((B_ROWS, C_PAD), lambda t: (0, 0)),
        ],
        out_specs=pl.BlockSpec((s_tile, C_PAD), lambda t: (t, 0)),   # lane-dense bf16 output
        compiler_params=pltpu.CompilerParams(
            dimension_semantics=("parallel",),        # disjoint outputs -> megacore on v7x
            vmem_limit_bytes=32 * 1024 * 1024),
    )(x3, w_slab, b_slab)


# ------------------- parameter / input construction (glue) -------------------

def init_params(key, n_class):
    """Torch-Linear-like uniform(-1/sqrt(fan_in), 1/sqrt(fan_in)) parameters."""
    shapes = {
        "w1v": (2, 16), "b1v": (16,), "w2v": (16, 32), "b2v": (32,),
        "w1d": (K_NEIGHBOR, 16), "b1d": (16,), "w2d": (16, 32), "b2d": (32,),
        "wc1": (64, 64), "bc1": (64,), "wc2": (64, 32), "bc2": (32,),
        "wc3": (32, n_class), "bc3": (n_class,),
    }
    fan_in = {"w1v": 2, "b1v": 2, "w2v": 16, "b2v": 16,
              "w1d": K_NEIGHBOR, "b1d": K_NEIGHBOR, "w2d": 16, "b2d": 16,
              "wc1": 64, "bc1": 64, "wc2": 64, "bc2": 64, "wc3": 32, "bc3": 32}
    names = sorted(shapes)
    keys = jax.random.split(key, len(names))
    return {n: jax.random.uniform(k, shapes[n], jnp.float32,
                                  -1.0 / np.sqrt(fan_in[n]), 1.0 / np.sqrt(fan_in[n]))
            for n, k in zip(names, keys)}


def pack_params(p, n_class):
    """Pack weights into one bf16 (208,128) slab (block-diagonal W1/W2) + f32 (8,128) biases."""
    assert n_class <= C_PAD
    w = np.zeros((W_ROWS, C_PAD), np.float32)
    b = np.zeros((B_ROWS, C_PAD), np.float32)
    # block-diagonal W1 (16,32): vel rows 0:2 -> cols 0:16, dist rows 8:8+K -> cols 16:32
    w[W1_R + 0:W1_R + 2, 0:16] = np.asarray(p["w1v"])
    w[W1_R + 8:W1_R + 8 + K_NEIGHBOR, 16:32] = np.asarray(p["w1d"])
    b[B1_R, 0:16] = np.asarray(p["b1v"])
    b[B1_R, 16:32] = np.asarray(p["b1d"])
    # block-diagonal W2 (32,64): output rows are [V | D]
    w[W2_R + 0:W2_R + 16, 0:32] = np.asarray(p["w2v"])
    w[W2_R + 16:W2_R + 32, 32:64] = np.asarray(p["w2d"])
    b[B2_R, 0:32] = np.asarray(p["b2v"])
    b[B2_R, 32:64] = np.asarray(p["b2d"])
    # classifier
    w[WC1_R:WC1_R + 64, 0:64] = np.asarray(p["wc1"])
    b[BC1_R, 0:64] = np.asarray(p["bc1"])
    w[WC2_R:WC2_R + 64, 0:32] = np.asarray(p["wc2"])
    b[BC2_R, 0:32] = np.asarray(p["bc2"])
    w[WC3_R:WC3_R + 32, 0:n_class] = np.asarray(p["wc3"])
    b[BC3_R, :] = NEG_BIG                       # padded classes -> softmax mass 0
    b[BC3_R, 0:n_class] = np.asarray(p["bc3"])
    return jnp.asarray(w, jnp.bfloat16), jnp.asarray(b, jnp.float32)


def build_inputs(key, lengths, s_tile):
    """Flat vel/dist samples -> packed (a_blk, s_pad, 16) slot-major rows (tile-independent)."""
    lengths = [int(v) for v in lengths]
    S = len(lengths)
    n_total = sum(lengths)
    a_blk = max(lengths)
    s_pad = _round_up(S, s_tile)

    kv, kd = jax.random.split(key)
    vel = jax.random.normal(kv, (n_total, 2), jnp.float32)
    dist = jnp.abs(jax.random.normal(kd, (n_total, K_NEIGHBOR), jnp.float32)) * 3.0
    vel_np, dist_np = np.asarray(vel), np.asarray(dist)

    x3 = np.zeros((a_blk, s_pad, IN_W), np.float32)
    off = 0
    for s, n in enumerate(lengths):
        x3[:n, s, 0:2] = vel_np[off:off + n]
        x3[:n, s, 8:8 + K_NEIGHBOR] = dist_np[off:off + n]
        x3[:n, s, 7] = 1.0 / n                  # per-row mean-pooling weight (0 for padding)
        off += n
    return vel, dist, jnp.asarray(x3), a_blk, s_pad


def reference_forward(vel, dist, lengths, p):
    """Pure-JAX f32 reference mirroring the PyTorch module semantics."""
    lrelu = lambda v: jnp.where(v > 0, v, NEG_SLOPE * v)
    d = jnp.exp(-dist / 5.0)
    V = lrelu(lrelu(vel @ p["w1v"] + p["b1v"]) @ p["w2v"] + p["b2v"])
    D = lrelu(lrelu(d @ p["w1d"] + p["b1d"]) @ p["w2d"] + p["b2d"])
    offs = np.insert(np.cumsum(lengths), 0, 0)
    hs = [jnp.concatenate([V[offs[i]:offs[i + 1]].mean(0),
                           D[offs[i]:offs[i + 1]].mean(0)])
          for i in range(len(lengths))]
    H = jnp.stack(hs)
    h1 = lrelu(H @ p["wc1"] + p["bc1"])
    h2 = lrelu(h1 @ p["wc2"] + p["bc2"])
    logits = h2 @ p["wc3"] + p["bc3"]
    return jax.nn.softmax(logits, axis=-1)


if __name__ == "__main__":
    key = jax.random.PRNGKey(0)
    k_params, k_data = jax.random.split(key)

    n_class = 4
    # 96 samples, deterministic variable agent counts 1..12 (624 agent rows total).
    lengths = [(7 * i) % 12 + 1 for i in range(96)]

    params = init_params(k_params, n_class)
    w_slab, b_slab = pack_params(params, n_class)

    a_blk = max(lengths)
    s_tile = choose_s_tile(len(lengths), a_blk)         # -> 16 here: 6 even grid steps
    vel, dist, x3, a_blk, s_pad = build_inputs(k_data, lengths, s_tile)

    y_pad = crowd_classifier_forward(x3, w_slab, b_slab, s_tile=s_tile)
    y_pad = jax.block_until_ready(y_pad)
    y = np.asarray(y_pad.astype(jnp.float32))[:len(lengths), :n_class]  # drop padding

    y_ref = np.asarray(reference_forward(vel, dist, lengths, params))
    # bf16 weights/activations/output + approx reciprocal -> ~1e-2 level agreement vs f32.
    np.testing.assert_allclose(y, y_ref, rtol=2e-2, atol=2e-2)
    assert np.allclose(y.sum(axis=-1), 1.0, atol=2e-2)

    print("KERNEL_OK")
</pallas_src>

<mosaic_0001>
module attributes {stable_mosaic.version = 11 : i64} {
  func.func @kernel(%arg0: i32, %arg1: memref<12x16x16xf32, #tpu.memory_space<vmem>>, %arg2: memref<208x128xbf16, #tpu.memory_space<vmem>>, %arg3: memref<8x128xf32, #tpu.memory_space<vmem>>, %arg4: memref<16x128xbf16, #tpu.memory_space<vmem>>) attributes {dimension_semantics = [#tpu.dimension_semantics<parallel>], iteration_bounds = array<i64: 6>, scalar_prefetch = 0 : i64, scratch_operands = 0 : i64, tpu.core_type = #tpu.core_type<tc>, window_params = [{transform_indices = @transform_0, window_bounds = array<i64: 12, 16, 16>}, {pipeline_mode = #tpu.pipeline_mode<synchronous>, transform_indices = @transform_1, window_bounds = array<i64: 208, 128>}, {pipeline_mode = #tpu.pipeline_mode<synchronous>, transform_indices = @transform_2, window_bounds = array<i64: 8, 128>}, {transform_indices = @transform_3, window_bounds = array<i64: 16, 128>}]} {
    %c0 = arith.constant 0 : index
    %c0_0 = arith.constant 0 : index
    %c0_1 = arith.constant 0 : index
    %0 = vector.load %arg1[%c0, %c0_0, %c0_1] : memref<12x16x16xf32, #tpu.memory_space<vmem>>, vector<12x16x16xf32>
    %1 = vector.shape_cast %0 : vector<12x16x16xf32> to vector<192x16xf32>
    %2 = tpu.iota {dimensions = array<i32: 1>} : vector<192x16xi32>
    %c8_i32 = arith.constant 8 : i32
    %3 = vector.broadcast %c8_i32 : i32 to vector<192x16xi32>
    %4 = arith.cmpi slt, %2, %3 : vector<192x16xi32>
    %cst = arith.constant 0.000000e+00 : f32
    %5 = vector.broadcast %cst : f32 to vector<192x16xf32>
    %6 = arith.select %4, %5, %1 : vector<192x16xi1>, vector<192x16xf32>
    %cst_2 = arith.constant -2.000000e-01 : f32
    %7 = vector.broadcast %cst_2 : f32 to vector<192x16xf32>
    %8 = arith.mulf %6, %7 : vector<192x16xf32>
    %9 = math.exp %8 : vector<192x16xf32>
    %10 = arith.select %4, %1, %9 : vector<192x16xi1>, vector<192x16xf32>
    %11 = arith.truncf %10 : vector<192x16xf32> to vector<192x16xbf16>
    %c0_3 = arith.constant 0 : index
    %c0_4 = arith.constant 0 : index
    %12 = vector.load %arg2[%c0_3, %c0_4] : memref<208x128xbf16, #tpu.memory_space<vmem>>, vector<16x32xbf16>
    %cst_5 = arith.constant dense<0.000000e+00> : vector<192x32xf32>
    %13 = tpu.matmul %11, %12, %cst_5 {dimension_numbers = #tpu.dot_dimension_numbers<[1], [0], [0], [1], [0, 0, 1, 1], [], []>} : vector<192x16xbf16>, vector<16x32xbf16>, vector<192x32xf32> -> vector<192x32xf32>
    %c0_6 = arith.constant 0 : index
    %c0_7 = arith.constant 0 : index
    %14 = vector.load %arg3[%c0_6, %c0_7] : memref<8x128xf32, #tpu.memory_space<vmem>>, vector<1x32xf32>
    %15 = vector.broadcast %14 : vector<1x32xf32> to vector<192x32xf32>
    %16 = arith.addf %13, %15 : vector<192x32xf32>
    %cst_8 = arith.constant 0.000000e+00 : f32
    %17 = vector.broadcast %cst_8 : f32 to vector<192x32xf32>
    %18 = arith.cmpf ogt, %16, %17 : vector<192x32xf32>
    %cst_9 = arith.constant 1.000000e-01 : f32
    %19 = vector.broadcast %cst_9 : f32 to vector<192x32xf32>
    %20 = arith.mulf %19, %16 : vector<192x32xf32>
    %21 = arith.select %18, %16, %20 : vector<192x32xi1>, vector<192x32xf32>
    %22 = arith.truncf %21 : vector<192x32xf32> to vector<192x32xbf16>
    %c16 = arith.constant 16 : index
    %c0_10 = arith.constant 0 : index
    %23 = vector.load %arg2[%c16, %c0_10] : memref<208x128xbf16, #tpu.memory_space<vmem>>, vector<32x64xbf16>
    %cst_11 = arith.constant dense<0.000000e+00> : vector<192x64xf32>
    %24 = tpu.matmul %22, %23, %cst_11 {dimension_numbers = #tpu.dot_dimension_numbers<[1], [0], [0], [1], [0, 0, 1, 1], [], []>} : vector<192x32xbf16>, vector<32x64xbf16>, vector<192x64xf32> -> vector<192x64xf32>
    %c1 = arith.constant 1 : index
    %c0_12 = arith.constant 0 : index
    %25 = vector.load %arg3[%c1, %c0_12] : memref<8x128xf32, #tpu.memory_space<vmem>>, vector<1x64xf32>
    %26 = vector.broadcast %25 : vector<1x64xf32> to vector<192x64xf32>
    %27 = arith.addf %24, %26 : vector<192x64xf32>
    %cst_13 = arith.constant 0.000000e+00 : f32
    %28 = vector.broadcast %cst_13 : f32 to vector<192x64xf32>
    %29 = arith.cmpf ogt, %27, %28 : vector<192x64xf32>
    %cst_14 = arith.constant 1.000000e-01 : f32
    %30 = vector.broadcast %cst_14 : f32 to vector<192x64xf32>
    %31 = arith.mulf %30, %27 : vector<192x64xf32>
    %32 = arith.select %29, %27, %31 : vector<192x64xi1>, vector<192x64xf32>
    %33 = vector.extract_strided_slice %1 {offsets = [0, 7], sizes = [192, 1], strides = [1, 1]} : vector<192x16xf32> to vector<192x1xf32>
    %34 = vector.broadcast %33 : vector<192x1xf32> to vector<192x64xf32>
    %35 = arith.mulf %32, %34 : vector<192x64xf32>
    %36 = vector.shape_cast %35 : vector<192x64xf32> to vector<12x16x64xf32>
    %cst_15 = arith.constant dense<0.000000e+00> : vector<16x64xf32>
    %37 = vector.multi_reduction <add>, %36, %cst_15 [0] : vector<12x16x64xf32> to vector<16x64xf32>
    %38 = arith.truncf %37 : vector<16x64xf32> to vector<16x64xbf16>
    %c48 = arith.constant 48 : index
    %c0_16 = arith.constant 0 : index
    %39 = vector.load %arg2[%c48, %c0_16] : memref<208x128xbf16, #tpu.memory_space<vmem>>, vector<64x64xbf16>
    %cst_17 = arith.constant dense<0.000000e+00> : vector<16x64xf32>
    %40 = tpu.matmul %38, %39, %cst_17 {dimension_numbers = #tpu.dot_dimension_numbers<[1], [0], [0], [1], [0, 0, 1, 1], [], []>} : vector<16x64xbf16>, vector<64x64xbf16>, vector<16x64xf32> -> vector<16x64xf32>
    %c2 = arith.constant 2 : index
    %c0_18 = arith.constant 0 : index
    %41 = vector.load %arg3[%c2, %c0_18] : memref<8x128xf32, #tpu.memory_space<vmem>>, vector<1x64xf32>
    %42 = vector.broadcast %41 : vector<1x64xf32> to vector<16x64xf32>
    %43 = arith.addf %40, %42 : vector<16x64xf32>
    %cst_19 = arith.constant 0.000000e+00 : f32
    %44 = vector.broadcast %cst_19 : f32 to vector<16x64xf32>
    %45 = arith.cmpf ogt, %43, %44 : vector<16x64xf32>
    %cst_20 = arith.constant 1.000000e-01 : f32
    %46 = vector.broadcast %cst_20 : f32 to vector<16x64xf32>
    %47 = arith.mulf %46, %43 : vector<16x64xf32>
    %48 = arith.select %45, %43, %47 : vector<16x64xi1>, vector<16x64xf32>
    %49 = arith.truncf %48 : vector<16x64xf32> to vector<16x64xbf16>
    %c112 = arith.constant 112 : index
    %c0_21 = arith.constant 0 : index
    %50 = vector.load %arg2[%c112, %c0_21] : memref<208x128xbf16, #tpu.memory_space<vmem>>, vector<64x32xbf16>
    %cst_22 = arith.constant dense<0.000000e+00> : vector<16x32xf32>
    %51 = tpu.matmul %49, %50, %cst_22 {dimension_numbers = #tpu.dot_dimension_numbers<[1], [0], [0], [1], [0, 0, 1, 1], [], []>} : vector<16x64xbf16>, vector<64x32xbf16>, vector<16x32xf32> -> vector<16x32xf32>
    %c3 = arith.constant 3 : index
    %c0_23 = arith.constant 0 : index
    %52 = vector.load %arg3[%c3, %c0_23] : memref<8x128xf32, #tpu.memory_space<vmem>>, vector<1x32xf32>
    %53 = vector.broadcast %52 : vector<1x32xf32> to vector<16x32xf32>
    %54 = arith.addf %51, %53 : vector<16x32xf32>
    %cst_24 = arith.constant 0.000000e+00 : f32
    %55 = vector.broadcast %cst_24 : f32 to vector<16x32xf32>
    %56 = arith.cmpf ogt, %54, %55 : vector<16x32xf32>
    %cst_25 = arith.constant 1.000000e-01 : f32
    %57 = vector.broadcast %cst_25 : f32 to vector<16x32xf32>
    %58 = arith.mulf %57, %54 : vector<16x32xf32>
    %59 = arith.select %56, %54, %58 : vector<16x32xi1>, vector<16x32xf32>
    %60 = arith.truncf %59 : vector<16x32xf32> to vector<16x32xbf16>
    %c176 = arith.constant 176 : index
    %c0_26 = arith.constant 0 : index
    %61 = vector.load %arg2[%c176, %c0_26] : memref<208x128xbf16, #tpu.memory_space<vmem>>, vector<32x128xbf16>
    %cst_27 = arith.constant dense<0.000000e+00> : vector<16x128xf32>
    %62 = tpu.matmul %60, %61, %cst_27 {dimension_numbers = #tpu.dot_dimension_numbers<[1], [0], [0], [1], [0, 0, 1, 1], [], []>} : vector<16x32xbf16>, vector<32x128xbf16>, vector<16x128xf32> -> vector<16x128xf32>
    %c4 = arith.constant 4 : index
    %c0_28 = arith.constant 0 : index
    %63 = vector.load %arg3[%c4, %c0_28] : memref<8x128xf32, #tpu.memory_space<vmem>>, vector<1x128xf32>
    %64 = vector.broadcast %63 : vector<1x128xf32> to vector<16x128xf32>
    %65 = arith.addf %62, %64 : vector<16x128xf32>
    %cst_29 = arith.constant dense<0xFF800000> : vector<16xf32>
    %66 = vector.multi_reduction <maximumf>, %65, %cst_29 [1] : vector<16x128xf32> to vector<16xf32>
    %67 = vector.shape_cast %66 : vector<16xf32> to vector<16x1xf32>
    %68 = vector.broadcast %67 : vector<16x1xf32> to vector<16x128xf32>
    %69 = arith.subf %65, %68 : vector<16x128xf32>
    %70 = math.exp %69 : vector<16x128xf32>
    %cst_30 = arith.constant dense<0.000000e+00> : vector<16xf32>
    %71 = vector.multi_reduction <add>, %70, %cst_30 [1] : vector<16x128xf32> to vector<16xf32>
    %72 = vector.shape_cast %71 : vector<16xf32> to vector<16x1xf32>
    %73 = tpu.reciprocal %72 {approx = true} : vector<16x1xf32> -> vector<16x1xf32>
    %74 = vector.broadcast %73 : vector<16x1xf32> to vector<16x128xf32>
    %75 = arith.mulf %70, %74 : vector<16x128xf32>
    %76 = arith.truncf %75 : vector<16x128xf32> to vector<16x128xbf16>
    %c0_31 = arith.constant 0 : index
    %c0_32 = arith.constant 0 : index
    %77 = vector.load %arg4[%c0_31, %c0_32] : memref<16x128xbf16, #tpu.memory_space<vmem>>, vector<16x128xbf16>
    tpu.vector_store %arg4[%c0_31, %c0_32], %76 {strides = array<i32>} : memref<16x128xbf16, #tpu.memory_space<vmem>>, vector<16x128xbf16>,
    return
  }
  func.func @transform_0(%arg0: i32) -> (i32, i32, i32) {
    %c0_i32 = arith.constant 0 : i32
    %c0_i32_0 = arith.constant 0 : i32
    %c0_i32_1 = arith.constant 0 : i32
    return %c0_i32, %arg0, %c0_i32_0 : i32, i32, i32
  }
  func.func @transform_1(%arg0: i32) -> (i32, i32) {
    %c0_i32 = arith.constant 0 : i32
    %c0_i32_0 = arith.constant 0 : i32
    %c0_i32_1 = arith.constant 0 : i32
    return %c0_i32, %c0_i32_0 : i32, i32
  }
  func.func @transform_2(%arg0: i32) -> (i32, i32) {
    %c0_i32 = arith.constant 0 : i32
    %c0_i32_0 = arith.constant 0 : i32
    %c0_i32_1 = arith.constant 0 : i32
    return %c0_i32, %c0_i32_0 : i32, i32
  }
  func.func @transform_3(%arg0: i32) -> (i32, i32) {
    %c0_i32 = arith.constant 0 : i32
    %c0_i32_0 = arith.constant 0 : i32
    return %arg0, %c0_i32 : i32, i32
  }
}

</mosaic_0001>

<llo_original>
// kernel: tpu_custom_call.1
$region0: #{tpu_custom_call.1}
  #allocation0 [shape = 'u32[]', space=smem, size = 0x4, offset = 0x4, fixed_abs, tag = 'smem constant byte address 0x4 - core index']
  #allocation1 [shape = 'u32[144,128]{1,0:T(1,128)}', space=vmem, size = 0x12000, scoped, tag = 'internal scratch']
  %s0 = inlined_call_operand.vmem [shape: f32[12,96,16], index: 0, kind: input, shape index: {}]
  %s1 = inlined_call_operand.vmem [shape: bf16[208,128], index: 1, kind: input, shape index: {}]
  %s2 = inlined_call_operand.vmem [shape: f32[8,128], index: 2, kind: input, shape index: {}]
  %s3 = inlined_call_operand.hbm [shape: bf16[96,128], index: 3, kind: output, shape index: {}]
  %s4 = sld [smem:[#allocation0]]
  $region83: #{tpu_custom_call.1} parent=0
    _
  %s6 = ssub.s32 1, %s4
  %s7 = scalar_select 0, %s6, %s4
  $region1: #{tpu_custom_call.1} parent=0
    #allocation2 [shape = 'u8[196608]{0}', space=vmem, size = 0x30000, scoped, tag = 'input window, operand 0']
    #allocation3 [shape = 'u8[8192]{0}', space=vmem, size = 0x2000, scoped, tag = 'output window, operand 0']
    #allocation4 [shape = 's32[2]{0}', space=sflag, size = 0x8, scoped, tag = 'scoped memory for tpu_custom_call.1']
    %8 = vsyncpa [#allocation4], 0
    %s9 = scalar_lea.sflag [#allocation4], 1
    %10 = vsyncpa %s9, 0
    loop: start=0, step=1, limit=8
    $region2: #{tpu_custom_call.1} parent=1 // loop_pre_header
      _
    $region3: #{tpu_custom_call.1} parent=1 // loop_header
      %s12 = sphi 0, %s16
      %p13 = scmp.ge.s32.totalorder %s12, 8
      %s22 = sphi 0, %s24
      %s25 = sphi 0, %s22
      %s26 = sphi 0, %s25
      %s42 = sphi 0, %s26
      %s46 = sphi 0, %s46
      %s48 = sphi 0, %s46
      %s49 = sphi 0, %s48
      %s63 = sphi 0, %s49
      %s67 = sphi 0, %s67
      %s69 = sphi 0, %s67
      %s70 = sphi 0, %s69
      %s84 = sphi 0, %s70
      %s90 = sphi 0, %s92
      %s93 = sphi 0, %s90
      %s94 = sphi 0, %s93
      %s110 = sphi 0, %s94
    $region4: #{tpu_custom_call.1} parent=1 // loop_header_branch
      %15 = sbr.rel (%p13) target = $region8
    $region5: #{tpu_custom_call.1} parent=1 // loop_body
      %s17 = ssub.s32 %s12, 1
      %s18 = ssub.s32 %s12, 2
      %s19 = sadd.s32 %s12, 1
      %s20 = ssub.s32 %s12, %s19
      %p21 = scmp.eq.s32.totalorder %s20, 0
      %s23 = sadd.s32 %s22, 1
      %s24 = scalar_select %p21, %s22, %s23
      %p27 = pneg %p21
      %p28 = scmp.eq.s32.totalorder %s12, 5
      %p29 = por %p27, %p28
      %p30 = scmp.ne.s32.totalorder %s22, %s25
      %p31 = scmp.eq.s32.totalorder %s12, 0
      %p32 = por %p30, %p31
      %p33 = scmp.ne.s32.totalorder %s22, %s25
      %p34 = scmp.eq.s32.totalorder %s17, 5
      %p35 = por %p33, %p34
      %p36 = scmp.ne.s32.totalorder %s25, %s26
      %p37 = scmp.eq.s32.totalorder %s17, 0
      %p38 = por %p36, %p37
      %p39 = scmp.ne.s32.totalorder %s25, %s26
      %p40 = scmp.eq.s32.totalorder %s18, 5
      %p41 = por %p39, %p40
      %p43 = scmp.ne.s32.totalorder %s26, %s42
      %p44 = scmp.eq.s32.totalorder %s18, 0
      %p45 = por %p43, %p44
      %s47 = sadd.s32 %s46, 1
      %p50 = scmp.eq.s32.totalorder %s12, 5
      %p51 = scmp.ne.s32.totalorder %s46, %s48
      %p52 = scmp.eq.s32.totalorder %s12, 0
      %p53 = por %p51, %p52
      %p54 = scmp.ne.s32.totalorder %s46, %s48
      %p55 = scmp.eq.s32.totalorder %s17, 5
      %p56 = por %p54, %p55
      %p57 = scmp.ne.s32.totalorder %s48, %s49
      %p58 = scmp.eq.s32.totalorder %s17, 0
      %p59 = por %p57, %p58
      %p60 = scmp.ne.s32.totalorder %s48, %s49
      %p61 = scmp.eq.s32.totalorder %s18, 5
      %p62 = por %p60, %p61
      %p64 = scmp.ne.s32.totalorder %s49, %s63
      %p65 = scmp.eq.s32.totalorder %s18, 0
      %p66 = por %p64, %p65
      %s68 = sadd.s32 %s67, 1
      %p71 = scmp.eq.s32.totalorder %s12, 5
      %p72 = scmp.ne.s32.totalorder %s67, %s69
      %p73 = scmp.eq.s32.totalorder %s12, 0
      %p74 = por %p72, %p73
      %p75 = scmp.ne.s32.totalorder %s67, %s69
      %p76 = scmp.eq.s32.totalorder %s17, 5
      %p77 = por %p75, %p76
      %p78 = scmp.ne.s32.totalorder %s69, %s70
      %p79 = scmp.eq.s32.totalorder %s17, 0
      %p80 = por %p78, %p79
      %p81 = scmp.ne.s32.totalorder %s69, %s70
      %p82 = scmp.eq.s32.totalorder %s18, 5
      %p83 = por %p81, %p82
      %p85 = scmp.ne.s32.totalorder %s70, %s84
      %p86 = scmp.eq.s32.totalorder %s18, 0
      %p87 = por %p85, %p86
      %s88 = ssub.s32 %s12, %s19
      %p89 = scmp.eq.s32.totalorder %s88, 0
      %s91 = sadd.s32 %s90, 1
      %s92 = scalar_select %p89, %s90, %s91
      %p95 = pneg %p89
      %p96 = scmp.eq.s32.totalorder %s12, 5
      %p97 = por %p95, %p96
      %p98 = scmp.ne.s32.totalorder %s90, %s93
      %p99 = scmp.eq.s32.totalorder %s12, 0
      %p100 = por %p98, %p99
      %p101 = scmp.ne.s32.totalorder %s90, %s93
      %p102 = scmp.eq.s32.totalorder %s17, 5
      %p103 = por %p101, %p102
      %p104 = scmp.ne.s32.totalorder %s93, %s94
      %p105 = scmp.eq.s32.totalorder %s17, 0
      %p106 = por %p104, %p105
      %p107 = scmp.ne.s32.totalorder %s93, %s94
      %p108 = scmp.eq.s32.totalorder %s18, 5
      %p109 = por %p107, %p108
      %p111 = scmp.ne.s32.totalorder %s94, %s110
      %p112 = scmp.eq.s32.totalorder %s18, 0
      %p113 = por %p111, %p112
      %p114 = scmp.le.s32.totalorder 1, %s12
      %p115 = scmp.lt.s32.totalorder %s12, 7
      %p116 = pnand %p114, %p115
      %p117 = pneg %p116
      // Predicated region
      $region9: #{tpu_custom_call.1} parent=5 // pred_check
        _
      $region10: #{tpu_custom_call.1} parent=5 // pred_check_branch
        %119 = sbr.rel (%p116) target = $region12
      $region11: #{tpu_custom_call.1} parent=5 // pred_region
        %s120 = ssub.s32 %s12, 1
        // Predicated region
        $region13: #{tpu_custom_call.1} parent=11 // pred_check
          %p121 = pneg %p59
        $region14: #{tpu_custom_call.1} parent=11 // pred_check_branch
          %123 = sbr.rel (%p121) target = $region16
        $region15: #{tpu_custom_call.1} parent=11 // pred_region
          _
        $region16: #{tpu_custom_call.1} parent=11 // pred_fallthru
          _
        // Predicated region
        $region17: #{tpu_custom_call.1} parent=11 // pred_check
          %p124 = pneg %p80
        $region18: #{tpu_custom_call.1} parent=11 // pred_check_branch
          %126 = sbr.rel (%p124) target = $region20
        $region19: #{tpu_custom_call.1} parent=11 // pred_region
          _
        $region20: #{tpu_custom_call.1} parent=11 // pred_fallthru
          _
      $region12: #{tpu_custom_call.1} parent=5 // pred_fallthru
        _
      %p127 = scmp.lt.s32.totalorder %s12, 6
      // Predicated region
      $region21: #{tpu_custom_call.1} parent=5 // pred_check
        %p128 = pneg %p127
      $region22: #{tpu_custom_call.1} parent=5 // pred_check_branch
        %130 = sbr.rel (%p128) target = $region24
      $region23: #{tpu_custom_call.1} parent=5 // pred_region
        // Predicated region
        $region25: #{tpu_custom_call.1} parent=23 // pred_check
          %p131 = pneg %p32
        $region26: #{tpu_custom_call.1} parent=23 // pred_check_branch
          %133 = sbr.rel (%p131) target = $region28
        $region27: #{tpu_custom_call.1} parent=23 // pred_region
          %s134 = sand.u32 %s22, 1
          %s135 = sand.u32 %s22, 1
          %s136 = smul.addr %s135, 192
          %s137 = scalar_lea.vmem [#allocation2], %s136
          %s138 = smul.u32 2, %s12
          %s139 = smul.addr %s138, 8
          %s140 = scalar_lea.vmem %s0, %s139
          // Predicated region
          $region29: #{tpu_custom_call.1} parent=27 // pred_check
            _
          $region30: #{tpu_custom_call.1} parent=27 // pred_check_branch
            %142 = sbr.rel (0) target = $region32
          $region31: #{tpu_custom_call.1} parent=27 // pred_region
            // Predicated region
            $region33: #{tpu_custom_call.1} parent=31 // pred_check
              _
            $region34: #{tpu_custom_call.1} parent=31 // pred_check_branch
              %144 = sbr.rel (0) target = $region36
            $region35: #{tpu_custom_call.1} parent=31 // pred_region
              // Predicated region
              $region48: #{tpu_custom_call.1} parent=35 // pred_check
                _
              $region49: #{tpu_custom_call.1} parent=35 // pred_check_branch
                %205 = sbr.rel (0) target = $region51
              $region50: #{tpu_custom_call.1} parent=35 // pred_region
                loop: start=0, step=1, limit=1
                $region52: #{tpu_custom_call.1} parent=50 // loop_pre_header
                  _
                $region53: #{tpu_custom_call.1} parent=50 // loop_header
                  %s207 = sphi 0, %s211
                  %p208 = scmp.ge.s32.totalorder %s207, 1
                  %s212 = sphi %s140, %s140
                  %s213 = sphi %s137, %s137
                $region54: #{tpu_custom_call.1} parent=50 // loop_header_branch
                  %210 = sbr.rel (%p208) target = $region58
                $region55: #{tpu_custom_call.1} parent=50 // loop_body
                  %v214 = vld [vmem:[%s212] sm:$0xff]
                  %215 = vst [vmem:[%s213] sm:$0xff] %v214
                  %v216 = vld [vmem:[%s212 + $0x8] sm:$0xff]
                  %217 = vst [vmem:[%s213 + $0x8] sm:$0xff] %v216
                  %v218 = vld [vmem:[%s212 + $0x60] sm:$0xff]
                  %219 = vst [vmem:[%s213 + $0x10] sm:$0xff] %v218
                  %v220 = vld [vmem:[%s212 + $0x68] sm:$0xff]
                  %221 = vst [vmem:[%s213 + $0x18] sm:$0xff] %v220
                  %v222 = vld [vmem:[%s212 + $0xc0] sm:$0xff]
                  %223 = vst [vmem:[%s213 + $0x20] sm:$0xff] %v222
                  %v224 = vld [vmem:[%s212 + $0xc8] sm:$0xff]
                  %225 = vst [vmem:[%s213 + $0x28] sm:$0xff] %v224
                  %v226 = vld [vmem:[%s212 + $0x120] sm:$0xff]
                  %227 = vst [vmem:[%s213 + $0x30] sm:$0xff] %v226
                  %v228 = vld [vmem:[%s212 + $0x128] sm:$0xff]
                  %229 = vst [vmem:[%s213 + $0x38] sm:$0xff] %v228
                  %v230 = vld [vmem:[%s212 + $0x180] sm:$0xff]
                  %231 = vst [vmem:[%s213 + $0x40] sm:$0xff] %v230
                  %v232 = vld [vmem:[%s212 + $0x188] sm:$0xff]
                  %233 = vst [vmem:[%s213 + $0x48] sm:$0xff] %v232
                  %v234 = vld [vmem:[%s212 + $0x1e0] sm:$0xff]
                  %235 = vst [vmem:[%s213 + $0x50] sm:$0xff] %v234
                  %v236 = vld [vmem:[%s212 + $0x1e8] sm:$0xff]
                  %237 = vst [vmem:[%s213 + $0x58] sm:$0xff] %v236
                  %v238 = vld [vmem:[%s212 + $0x240] sm:$0xff]
                  %239 = vst [vmem:[%s213 + $0x60] sm:$0xff] %v238
                  %v240 = vld [vmem:[%s212 + $0x248] sm:$0xff]
                  %241 = vst [vmem:[%s213 + $0x68] sm:$0xff] %v240
                  %v242 = vld [vmem:[%s212 + $0x2a0] sm:$0xff]
                  %243 = vst [vmem:[%s213 + $0x70] sm:$0xff] %v242
                  %v244 = vld [vmem:[%s212 + $0x2a8] sm:$0xff]
                  %245 = vst [vmem:[%s213 + $0x78] sm:$0xff] %v244
                  %v246 = vld [vmem:[%s212 + $0x300] sm:$0xff]
                  %247 = vst [vmem:[%s213 + $0x80] sm:$0xff] %v246
                  %v248 = vld [vmem:[%s212 + $0x308] sm:$0xff]
                  %249 = vst [vmem:[%s213 + $0x88] sm:$0xff] %v248
                  %v250 = vld [vmem:[%s212 + $0x360] sm:$0xff]
                  %251 = vst [vmem:[%s213 + $0x90] sm:$0xff] %v250
                  %v252 = vld [vmem:[%s212 + $0x368] sm:$0xff]
                  %253 = vst [vmem:[%s213 + $0x98] sm:$0xff] %v252
                  %v254 = vld [vmem:[%s212 + $0x3c0] sm:$0xff]
                  %255 = vst [vmem:[%s213 + $0xa0] sm:$0xff] %v254
                  %v256 = vld [vmem:[%s212 + $0x3c8] sm:$0xff]
                  %257 = vst [vmem:[%s213 + $0xa8] sm:$0xff] %v256
                  %v258 = vld [vmem:[%s212 + $0x420] sm:$0xff]
                  %259 = vst [vmem:[%s213 + $0xb0] sm:$0xff] %v258
                  %v260 = vld [vmem:[%s212 + $0x428] sm:$0xff]
                  %261 = vst [vmem:[%s213 + $0xb8] sm:$0xff] %v260
                $region56: #{tpu_custom_call.1} parent=50 // loop_footer
                  %s211 = sadd.s32 1, %s207
                $region57: #{tpu_custom_call.1} parent=50 // loop_footer_branch
                  %206 = sbr.rel target = $region53
                $region58: #{tpu_custom_call.1} parent=50 // loop_exit
                  _
              $region51: #{tpu_custom_call.1} parent=35 // pred_fallthru
                _
              // Predicated region
              $region59: #{tpu_custom_call.1} parent=35 // pred_check
                _
              $region60: #{tpu_custom_call.1} parent=35 // pred_check_branch
                %263 = sbr.rel target = $region62
              $region61: #{tpu_custom_call.1} parent=35 // pred_region
                _
              $region62: #{tpu_custom_call.1} parent=35 // pred_fallthru
                _
            $region36: #{tpu_custom_call.1} parent=31 // pred_fallthru
              _
            // Predicated region
            $region37: #{tpu_custom_call.1} parent=31 // pred_check
              _
            $region38: #{tpu_custom_call.1} parent=31 // pred_check_branch
              %146 = sbr.rel target = $region40
            $region39: #{tpu_custom_call.1} parent=31 // pred_region
              loop: start=0, step=1, limit=1
              $region41: #{tpu_custom_call.1} parent=39 // loop_pre_header
                _
              $region42: #{tpu_custom_call.1} parent=39 // loop_header
                %s149 = sphi 0, %s153
                %p150 = scmp.ge.s32.totalorder %s149, 1
                %s154 = sphi %s140, %s140
                %s155 = sphi %s137, %s137
              $region43: #{tpu_custom_call.1} parent=39 // loop_header_branch
                %152 = sbr.rel (%p150) target = $region47
              $region44: #{tpu_custom_call.1} parent=39 // loop_body
                %v156 = vld [vmem:[%s154] sm:$0xff]
                %157 = vst [vmem:[%s155] sm:$0xff] %v156
                %v158 = vld [vmem:[%s154 + $0x8] sm:$0xff]
                %159 = vst [vmem:[%s155 + $0x8] sm:$0xff] %v158
                %v160 = vld [vmem:[%s154 + $0x60] sm:$0xff]
                %161 = vst [vmem:[%s155 + $0x10] sm:$0xff] %v160
                %v162 = vld [vmem:[%s154 + $0x68] sm:$0xff]
                %163 = vst [vmem:[%s155 + $0x18] sm:$0xff] %v162
                %v164 = vld [vmem:[%s154 + $0xc0] sm:$0xff]
                %165 = vst [vmem:[%s155 + $0x20] sm:$0xff] %v164
                %v166 = vld [vmem:[%s154 + $0xc8] sm:$0xff]
                %167 = vst [vmem:[%s155 + $0x28] sm:$0xff] %v166
                %v168 = vld [vmem:[%s154 + $0x120] sm:$0xff]
                %169 = vst [vmem:[%s155 + $0x30] sm:$0xff] %v168
                %v170 = vld [vmem:[%s154 + $0x128] sm:$0xff]
                %171 = vst [vmem:[%s155 + $0x38] sm:$0xff] %v170
                %v172 = vld [vmem:[%s154 + $0x180] sm:$0xff]
                %173 = vst [vmem:[%s155 + $0x40] sm:$0xff] %v172
                %v174 = vld [vmem:[%s154 + $0x188] sm:$0xff]
                %175 = vst [vmem:[%s155 + $0x48] sm:$0xff] %v174
                %v176 = vld [vmem:[%s154 + $0x1e0] sm:$0xff]
                %177 = vst [vmem:[%s155 + $0x50] sm:$0xff] %v176
                %v178 = vld [vmem:[%s154 + $0x1e8] sm:$0xff]
                %179 = vst [vmem:[%s155 + $0x58] sm:$0xff] %v178
                %v180 = vld [vmem:[%s154 + $0x240] sm:$0xff]
                %181 = vst [vmem:[%s155 + $0x60] sm:$0xff] %v180
                %v182 = vld [vmem:[%s154 + $0x248] sm:$0xff]
                %183 = vst [vmem:[%s155 + $0x68] sm:$0xff] %v182
                %v184 = vld [vmem:[%s154 + $0x2a0] sm:$0xff]
                %185 = vst [vmem:[%s155 + $0x70] sm:$0xff] %v184
                %v186 = vld [vmem:[%s154 + $0x2a8] sm:$0xff]
                %187 = vst [vmem:[%s155 + $0x78] sm:$0xff] %v186
                %v188 = vld [vmem:[%s154 + $0x300] sm:$0xff]
                %189 = vst [vmem:[%s155 + $0x80] sm:$0xff] %v188
                %v190 = vld [vmem:[%s154 + $0x308] sm:$0xff]
                %191 = vst [vmem:[%s155 + $0x88] sm:$0xff] %v190
                %v192 = vld [vmem:[%s154 + $0x360] sm:$0xff]
                %193 = vst [vmem:[%s155 + $0x90] sm:$0xff] %v192
                %v194 = vld [vmem:[%s154 + $0x368] sm:$0xff]
                %195 = vst [vmem:[%s155 + $0x98] sm:$0xff] %v194
                %v196 = vld [vmem:[%s154 + $0x3c0] sm:$0xff]
                %197 = vst [vmem:[%s155 + $0xa0] sm:$0xff] %v196
                %v198 = vld [vmem:[%s154 + $0x3c8] sm:$0xff]
                %199 = vst [vmem:[%s155 + $0xa8] sm:$0xff] %v198
                %v200 = vld [vmem:[%s154 + $0x420] sm:$0xff]
                %201 = vst [vmem:[%s155 + $0xb0] sm:$0xff] %v200
                %v202 = vld [vmem:[%s154 + $0x428] sm:$0xff]
                %203 = vst [vmem:[%s155 + $0xb8] sm:$0xff] %v202
              $region45: #{tpu_custom_call.1} parent=39 // loop_footer
                %s153 = sadd.s32 1, %s149
              $region46: #{tpu_custom_call.1} parent=39 // loop_footer_branch
                %148 = sbr.rel target = $region42
              $region47: #{tpu_custom_call.1} parent=39 // loop_exit
                _
            $region40: #{tpu_custom_call.1} parent=31 // pred_fallthru
              _
          $region32: #{tpu_custom_call.1} parent=27 // pred_fallthru
            _
          %264 = vnop
        $region28: #{tpu_custom_call.1} parent=23 // pred_fallthru
          _
      $region24: #{tpu_custom_call.1} parent=5 // pred_fallthru
        _
      %p265 = scmp.le.s32.totalorder 1, %s12
      %p266 = scmp.lt.s32.totalorder %s12, 7
      %p267 = pnand %p265, %p266
      %p268 = pneg %p267
      // Predicated region
      $region63: #{tpu_custom_call.1} parent=5 // pred_check
        _
      $region64: #{tpu_custom_call.1} parent=5 // pred_check_branch
        %270 = sbr.rel (%p267) target = $region66
      $region65: #{tpu_custom_call.1} parent=5 // pred_region
        %s271 = ssub.s32 %s12, 1
        %s272 = sand.u32 %s25, 1
        %s273 = sand.u32 %s25, 1
        %s274 = smul.addr %s273, 192
        %s275 = scalar_lea.vmem [#allocation2], %s274
        // Predicated region
        $region67: #{tpu_custom_call.1} parent=65 // pred_check
          %p276 = pneg %p38
        $region68: #{tpu_custom_call.1} parent=65 // pred_check_branch
          %278 = sbr.rel (%p276) target = $region70
        $region69: #{tpu_custom_call.1} parent=65 // pred_region
          _
        $region70: #{tpu_custom_call.1} parent=65 // pred_fallthru
          _
        %s279 = sand.u32 %s25, 1
        %s280 = sand.u32 %s25, 1
        %s281 = smul.addr %s280, 192
        %s282 = scalar_lea.vmem [#allocation2], %s281
        %p283 = pneg %p38
        %p284 = pneg %p35
        %p285 = pneg %p59
        %p286 = pneg %p56
        %p287 = pneg %p80
        %p288 = pneg %p77
        %p289 = pneg %p106
        %p290 = pneg %p103
        %s291 = sand.u32 %s93, 1
        %s292 = scalar_lea.sflag [#allocation4], %s291
        %s293 = sand.u32 %s93, 1
        %s294 = smul.addr %s293, 8
        %s295 = scalar_lea.vmem [#allocation3], %s294
        %s296 = smul.u32 2, %s17
        %s297 = smul.u32 2, %s17
        %v299 = vld [vmem:[%s275] sm:$0xff]
        %v300 = vld [vmem:[%s275 + $0x8] sm:$0xff]
        %v301 = vld [vmem:[%s275 + $0x10] sm:$0xff]
        %v302 = vld [vmem:[%s275 + $0x18] sm:$0xff]
        %v303 = vld [vmem:[%s275 + $0x20] sm:$0xff]
        %v304 = vld [vmem:[%s275 + $0x28] sm:$0xff]
        %v305 = vld [vmem:[%s275 + $0x30] sm:$0xff]
        %v306 = vld [vmem:[%s275 + $0x38] sm:$0xff]
        %v307 = vld [vmem:[%s275 + $0x40] sm:$0xff]
        %v308 = vld [vmem:[%s275 + $0x48] sm:$0xff]
        %v309 = vld [vmem:[%s275 + $0x50] sm:$0xff]
        %v310 = vld [vmem:[%s275 + $0x58] sm:$0xff]
        %v311 = vld [vmem:[%s275 + $0x60] sm:$0xff]
        %v312 = vld [vmem:[%s275 + $0x68] sm:$0xff]
        %v313 = vld [vmem:[%s275 + $0x70] sm:$0xff]
        %v314 = vld [vmem:[%s275 + $0x78] sm:$0xff]
        %v315 = vld [vmem:[%s275 + $0x80] sm:$0xff]
        %v316 = vld [vmem:[%s275 + $0x88] sm:$0xff]
        %v317 = vld [vmem:[%s275 + $0x90] sm:$0xff]
        %v318 = vld [vmem:[%s275 + $0x98] sm:$0xff]
        %v319 = vld [vmem:[%s275 + $0xa0] sm:$0xff]
        %v320 = vld [vmem:[%s275 + $0xa8] sm:$0xff]
        %v321 = vld [vmem:[%s275 + $0xb0] sm:$0xff]
        %v322 = vld [vmem:[%s275 + $0xb8] sm:$0xff]
        %v323 = vlaneseq
        %v324 = vand.u32 %v323, 127
        %vm325 = vcmp.lt.s32.totalorder %v324, 8
        %v326 = vsel %vm325, 0.0, %v299
        %v327 = vsel %vm325, 0.0, %v300
        %v328 = vsel %vm325, 0.0, %v301
        %v329 = vsel %vm325, 0.0, %v302
        %v330 = vsel %vm325, 0.0, %v303
        %v331 = vsel %vm325, 0.0, %v304
        %v332 = vsel %vm325, 0.0, %v305
        %v333 = vsel %vm325, 0.0, %v306
        %v334 = vsel %vm325, 0.0, %v307
        %v335 = vsel %vm325, 0.0, %v308
        %v336 = vsel %vm325, 0.0, %v309
        %v337 = vsel %vm325, 0.0, %v310
        %v338 = vsel %vm325, 0.0, %v311
        %v339 = vsel %vm325, 0.0, %v312
        %v340 = vsel %vm325, 0.0, %v313
        %v341 = vsel %vm325, 0.0, %v314
        %v342 = vsel %vm325, 0.0, %v315
        %v343 = vsel %vm325, 0.0, %v316
        %v344 = vsel %vm325, 0.0, %v317
        %v345 = vsel %vm325, 0.0, %v318
        %v346 = vsel %vm325, 0.0, %v319
        %v347 = vsel %vm325, 0.0, %v320
        %v348 = vsel %vm325, 0.0, %v321
        %v349 = vsel %vm325, 0.0, %v322
        %v350 = vmul.f32 %v326, -0.2
        %v351 = vmul.f32 %v327, -0.2
        %v352 = vmul.f32 %v328, -0.2
        %v353 = vmul.f32 %v329, -0.2
        %v354 = vmul.f32 %v330, -0.2
        %v355 = vmul.f32 %v331, -0.2
        %v356 = vmul.f32 %v332, -0.2
        %v357 = vmul.f32 %v333, -0.2
        %v358 = vmul.f32 %v334, -0.2
        %v359 = vmul.f32 %v335, -0.2
        %v360 = vmul.f32 %v336, -0.2
        %v361 = vmul.f32 %v337, -0.2
        %v362 = vmul.f32 %v338, -0.2
        %v363 = vmul.f32 %v339, -0.2
        %v364 = vmul.f32 %v340, -0.2
        %v365 = vmul.f32 %v341, -0.2
        %v366 = vmul.f32 %v342, -0.2
        %v367 = vmul.f32 %v343, -0.2
        %v368 = vmul.f32 %v344, -0.2
        %v369 = vmul.f32 %v345, -0.2
        %v370 = vmul.f32 %v346, -0.2
        %v371 = vmul.f32 %v347, -0.2
        %v372 = vmul.f32 %v348, -0.2
        %v373 = vmul.f32 %v349, -0.2
        %v374 = vmul.f32 %v350, 1.442695
        %v375 = vpow.pop %v374
        %v376 = vmul.f32 %v351, 1.442695
        %v377 = vpow.pop %v376
        %v378 = vmul.f32 %v352, 1.442695
        %v379 = vpow.pop %v378
        %v380 = vmul.f32 %v353, 1.442695
        %v381 = vpow.pop %v380
        %v382 = vmul.f32 %v354, 1.442695
        %v383 = vpow.pop %v382
        %v384 = vmul.f32 %v355, 1.442695
        %v385 = vpow.pop %v384
        %v386 = vmul.f32 %v356, 1.442695
        %v387 = vpow.pop %v386
        %v388 = vmul.f32 %v357, 1.442695
        %v389 = vpow.pop %v388
        %v390 = vmul.f32 %v358, 1.442695
        %v391 = vpow.pop %v390
        %v392 = vmul.f32 %v359, 1.442695
        %v393 = vpow.pop %v392
        %v394 = vmul.f32 %v360, 1.442695
        %v395 = vpow.pop %v394
        %v396 = vmul.f32 %v361, 1.442695
        %v397 = vpow.pop %v396
        %v398 = vmul.f32 %v362, 1.442695
        %v399 = vpow.pop %v398
        %v400 = vmul.f32 %v363, 1.442695
        %v401 = vpow.pop %v400
        %v402 = vmul.f32 %v364, 1.442695
        %v403 = vpow.pop %v402
        %v404 = vmul.f32 %v365, 1.442695
        %v405 = vpow.pop %v404
        %v406 = vmul.f32 %v366, 1.442695
        %v407 = vpow.pop %v406
        %v408 = vmul.f32 %v367, 1.442695
        %v409 = vpow.pop %v408
        %v410 = vmul.f32 %v368, 1.442695
        %v411 = vpow.pop %v410
        %v412 = vmul.f32 %v369, 1.442695
        %v413 = vpow.pop %v412
        %v414 = vmul.f32 %v370, 1.442695
        %v415 = vpow.pop %v414
        %v416 = vmul.f32 %v371, 1.442695
        %v417 = vpow.pop %v416
        %v418 = vmul.f32 %v372, 1.442695
        %v419 = vpow.pop %v418
        %v420 = vmul.f32 %v373, 1.442695
        %v421 = vpow.pop %v420
        %v422 = vsel %vm325, %v299, %v375
        %v423 = vsel %vm325, %v300, %v377
        %v424 = vsel %vm325, %v301, %v379
        %v425 = vsel %vm325, %v302, %v381
        %v426 = vsel %vm325, %v303, %v383
        %v427 = vsel %vm325, %v304, %v385
        %v428 = vsel %vm325, %v305, %v387
        %v429 = vsel %vm325, %v306, %v389
        %v430 = vsel %vm325, %v307, %v391
        %v431 = vsel %vm325, %v308, %v393
        %v432 = vsel %vm325, %v309, %v395
        %v433 = vsel %vm325, %v310, %v397
        %v434 = vsel %vm325, %v311, %v399
        %v435 = vsel %vm325, %v312, %v401
        %v436 = vsel %vm325, %v313, %v403
        %v437 = vsel %vm325, %v314, %v405
        %v438 = vsel %vm325, %v315, %v407
        %v439 = vsel %vm325, %v316, %v409
        %v440 = vsel %vm325, %v317, %v411
        %v441 = vsel %vm325, %v318, %v413
        %v442 = vsel %vm325, %v319, %v415
        %v443 = vsel %vm325, %v320, %v417
        %v444 = vsel %vm325, %v321, %v419
        %v445 = vsel %vm325, %v322, %v421
        %v446 = vpack.c.bf16 %v423, %v422
        %v447 = vpack.c.bf16 %v425, %v424
        %v448 = vpack.c.bf16 %v427, %v426
        %v449 = vpack.c.bf16 %v429, %v428
        %v450 = vpack.c.bf16 %v431, %v430
        %v451 = vpack.c.bf16 %v433, %v432
        %v452 = vpack.c.bf16 %v435, %v434
        %v453 = vpack.c.bf16 %v437, %v436
        %v454 = vpack.c.bf16 %v439, %v438
        %v455 = vpack.c.bf16 %v441, %v440
        %v456 = vpack.c.bf16 %v443, %v442
        %v457 = vpack.c.bf16 %v445, %v444
        %v458 = vld [vmem:[%s1] sm:$0xf]
        %v459 = vld [vmem:[%s1 + $0x4] sm:$0xf]
        %v460 = vld [vmem:[%s2] sm:$0x1]
        %v461 = vlaneseq
        %v462 = vshrl.u32 %v461, 7
        %v463 = vsub.s32 0, %v462
        %v464 = vrot.slane %v460, %v463
        %v467 = vunpack.c.l.b16 %v458
        %v468 = vunpack.c.l.b16 %v459
        %v469 = vpack.c.b16 %v468, %v467
        %vm471 = vcmask 130048
        %v473 = vsel %vm471, %v446, 0
        %v476 = vsel %vm471, %v447, 0
        %v479 = vsel %vm471, %v448, 0
        %v482 = vsel %vm471, %v449, 0
        %v485 = vsel %vm471, %v450, 0
        %v488 = vsel %vm471, %v451, 0
        %v491 = vsel %vm471, %v452, 0
        %v494 = vsel %vm471, %v453, 0
        %v497 = vsel %vm471, %v454, 0
        %v500 = vsel %vm471, %v455, 0
        %v503 = vsel %vm471, %v456, 0
        %v506 = vsel %vm471, %v457, 0
        %508 = vmatprep.subr.bf16.mxu0 0
        %509 = vmatpush1.bf16.msra.mxu0 %v469
        %510 = vmatprep.subr.bf16.mxu0 0
        %511 = vmatpush1.bf16.msra.mxu0 0
        %512 = vmatprep.subr.bf16.mxu0 0
        %513 = vmatpush1.bf16.msra.mxu0 0
        %514 = vmatprep.subr.bf16.mxu0 0
        %515 = vmatpush1.bf16.msra.mxu0 0
        %516 = vmatprep.subr.bf16.mxu0 0
        %517 = vmatpush1.bf16.msra.mxu0 0
        %518 = vmatprep.subr.bf16.mxu0 0
        %519 = vmatpush1.bf16.msra.mxu0 0
        %520 = vmatprep.subr.bf16.mxu0 0
        %521 = vmatpush1.bf16.msra.mxu0 0
        %522 = vmatprep.subr.bf16.mxu0 0
        %523 = vmatpush1.bf16.msra.mxu0 0
        %524 = vmatprep.subr.bf16.mxu0 0
        %525 = vmatpush1.bf16.msra.mxu0 0
        %526 = vmatprep.subr.bf16.mxu0 0
        %527 = vmatpush1.bf16.msra.mxu0 0
        %528 = vmatprep.subr.bf16.mxu0 0
        %529 = vmatpush1.bf16.msra.mxu0 0
        %530 = vmatprep.subr.bf16.mxu0 0
        %531 = vmatpush1.bf16.msra.mxu0 0
        %532 = vmatprep.subr.bf16.mxu0 0
        %533 = vmatpush1.bf16.msra.mxu0 0
        %534 = vmatprep.subr.bf16.mxu0 0
        %535 = vmatpush1.bf16.msra.mxu0 0
        %536 = vmatprep.subr.bf16.mxu0 0
        %537 = vmatpush1.bf16.msra.mxu0 0
        %538 = vmatprep.subr.bf16.mxu0 0
        %539 = vmatpush1.bf16.msra.mxu0 0
        %540 = vmatprep.mubr.bf16.mxu0 0
        %541 = vmatmul.mubr.bf16.gmra.mrb[0].mxu0 %v473
        %v542 = vpop.f32.mrb[0].mxu0
        %v543 = vadd.f32 %v464, %v542
        %v544 = vpop.f32.mrb[0].mxu0
        %v545 = vpop.f32.mrb[0].mxu0
        %v546 = vadd.f32 %v464, %v545
        %v547 = vpop.f32.mrb[0].mxu0
        %548 = vmatprep.mubr.bf16.mxu0 0
        %549 = vmatmul.mubr.bf16.gmra.mrb[0].mxu0 %v476
        %v550 = vpop.f32.mrb[0].mxu0
        %v551 = vadd.f32 %v464, %v550
        %v552 = vpop.f32.mrb[0].mxu0
        %v553 = vpop.f32.mrb[0].mxu0
        %v554 = vadd.f32 %v464, %v553
        %v555 = vpop.f32.mrb[0].mxu0
        %556 = vmatprep.mubr.bf16.mxu0 0
        %557 = vmatmul.mubr.bf16.gmra.mrb[0].mxu0 %v479
        %v558 = vpop.f32.mrb[0].mxu0
        %v559 = vadd.f32 %v464, %v558
        %v560 = vpop.f32.mrb[0].mxu0
        %v561 = vpop.f32.mrb[0].mxu0
        %v562 = vadd.f32 %v464, %v561
        %v563 = vpop.f32.mrb[0].mxu0
        %564 = vmatprep.mubr.bf16.mxu0 0
        %565 = vmatmul.mubr.bf16.gmra.mrb[0].mxu0 %v482
        %v566 = vpop.f32.mrb[0].mxu0
        %v567 = vadd.f32 %v464, %v566
        %v568 = vpop.f32.mrb[0].mxu0
        %v569 = vpop.f32.mrb[0].mxu0
        %v570 = vadd.f32 %v464, %v569
        %v571 = vpop.f32.mrb[0].mxu0
        %572 = vmatprep.mubr.bf16.mxu0 0
        %573 = vmatmul.mubr.bf16.gmra.mrb[0].mxu0 %v485
        %v574 = vpop.f32.mrb[0].mxu0
        %v575 = vadd.f32 %v464, %v574
        %v576 = vpop.f32.mrb[0].mxu0
        %v577 = vpop.f32.mrb[0].mxu0
        %v578 = vadd.f32 %v464, %v577
        %v579 = vpop.f32.mrb[0].mxu0
        %580 = vmatprep.mubr.bf16.mxu0 0
        %581 = vmatmul.mubr.bf16.gmra.mrb[0].mxu0 %v488
        %v582 = vpop.f32.mrb[0].mxu0
        %v583 = vadd.f32 %v464, %v582
        %v584 = vpop.f32.mrb[0].mxu0
        %v585 = vpop.f32.mrb[0].mxu0
        %v586 = vadd.f32 %v464, %v585
        %v587 = vpop.f32.mrb[0].mxu0
        %588 = vmatprep.mubr.bf16.mxu0 0
        %589 = vmatmul.mubr.bf16.gmra.mrb[0].mxu0 %v491
        %v590 = vpop.f32.mrb[0].mxu0
        %v591 = vadd.f32 %v464, %v590
        %v592 = vpop.f32.mrb[0].mxu0
        %v593 = vpop.f32.mrb[0].mxu0
        %v594 = vadd.f32 %v464, %v593
        %v595 = vpop.f32.mrb[0].mxu0
        %596 = vmatprep.mubr.bf16.mxu0 0
        %597 = vmatmul.mubr.bf16.gmra.mrb[0].mxu0 %v494
        %v598 = vpop.f32.mrb[0].mxu0
        %v599 = vadd.f32 %v464, %v598
        %v600 = vpop.f32.mrb[0].mxu0
        %v601 = vpop.f32.mrb[0].mxu0
        %v602 = vadd.f32 %v464, %v601
        %v603 = vpop.f32.mrb[0].mxu0
        %604 = vmatprep.mubr.bf16.mxu0 0
        %605 = vmatmul.mubr.bf16.gmra.mrb[0].mxu0 %v497
        %v606 = vpop.f32.mrb[0].mxu0
        %v607 = vadd.f32 %v464, %v606
        %v608 = vpop.f32.mrb[0].mxu0
        %v609 = vpop.f32.mrb[0].mxu0
        %v610 = vadd.f32 %v464, %v609
        %v611 = vpop.f32.mrb[0].mxu0
        %612 = vmatprep.mubr.bf16.mxu0 0
        %613 = vmatmul.mubr.bf16.gmra.mrb[0].mxu0 %v500
        %v614 = vpop.f32.mrb[0].mxu0
        %v615 = vadd.f32 %v464, %v614
        %v616 = vpop.f32.mrb[0].mxu0
        %v617 = vpop.f32.mrb[0].mxu0
        %v618 = vadd.f32 %v464, %v617
        %v619 = vpop.f32.mrb[0].mxu0
        %620 = vmatprep.mubr.bf16.mxu0 0
        %621 = vmatmul.mubr.bf16.gmra.mrb[0].mxu0 %v503
        %v622 = vpop.f32.mrb[0].mxu0
        %v623 = vadd.f32 %v464, %v622
        %v624 = vpop.f32.mrb[0].mxu0
        %v625 = vpop.f32.mrb[0].mxu0
        %v626 = vadd.f32 %v464, %v625
        %v627 = vpop.f32.mrb[0].mxu0
        %628 = vmatprep.mubr.bf16.mxu0 0
        %629 = vmatmul.mubr.bf16.gmra.mrb[0].mxu0 %v506
        %v630 = vpop.f32.mrb[0].mxu0
        %v631 = vadd.f32 %v464, %v630
        %v632 = vpop.f32.mrb[0].mxu0
        %v633 = vpop.f32.mrb[0].mxu0
        %v634 = vadd.f32 %v464, %v633
        %v635 = vpop.f32.mrb[0].mxu0
        %636 = vdwg.mxu0
        %vm637 = vcmp.gt.f32.partialorder %v543, 0.0
        %vm638 = vcmp.gt.f32.partialorder %v546, 0.0
        %vm639 = vcmp.gt.f32.partialorder %v551, 0.0
        %vm640 = vcmp.gt.f32.partialorder %v554, 0.0
        %vm641 = vcmp.gt.f32.partialorder %v559, 0.0
        %vm642 = vcmp.gt.f32.partialorder %v562, 0.0
        %vm643 = vcmp.gt.f32.partialorder %v567, 0.0
        %vm644 = vcmp.gt.f32.partialorder %v570, 0.0
        %vm645 = vcmp.gt.f32.partialorder %v575, 0.0
        %vm646 = vcmp.gt.f32.partialorder %v578, 0.0
        %vm647 = vcmp.gt.f32.partialorder %v583, 0.0
        %vm648 = vcmp.gt.f32.partialorder %v586, 0.0
        %vm649 = vcmp.gt.f32.partialorder %v591, 0.0
        %vm650 = vcmp.gt.f32.partialorder %v594, 0.0
        %vm651 = vcmp.gt.f32.partialorder %v599, 0.0
        %vm652 = vcmp.gt.f32.partialorder %v602, 0.0
        %vm653 = vcmp.gt.f32.partialorder %v607, 0.0
        %vm654 = vcmp.gt.f32.partialorder %v610, 0.0
        %vm655 = vcmp.gt.f32.partialorder %v615, 0.0
        %vm656 = vcmp.gt.f32.partialorder %v618, 0.0
        %vm657 = vcmp.gt.f32.partialorder %v623, 0.0
        %vm658 = vcmp.gt.f32.partialorder %v626, 0.0
        %vm659 = vcmp.gt.f32.partialorder %v631, 0.0
        %vm660 = vcmp.gt.f32.partialorder %v634, 0.0
        %v661 = vmul.f32 %v543, 0.1
        %v662 = vmul.f32 %v546, 0.1
        %v663 = vmul.f32 %v551, 0.1
        %v664 = vmul.f32 %v554, 0.1
        %v665 = vmul.f32 %v559, 0.1
        %v666 = vmul.f32 %v562, 0.1
        %v667 = vmul.f32 %v567, 0.1
        %v668 = vmul.f32 %v570, 0.1
        %v669 = vmul.f32 %v575, 0.1
        %v670 = vmul.f32 %v578, 0.1
        %v671 = vmul.f32 %v583, 0.1
        %v672 = vmul.f32 %v586, 0.1
        %v673 = vmul.f32 %v591, 0.1
        %v674 = vmul.f32 %v594, 0.1
        %v675 = vmul.f32 %v599, 0.1
        %v676 = vmul.f32 %v602, 0.1
        %v677 = vmul.f32 %v607, 0.1
        %v678 = vmul.f32 %v610, 0.1
        %v679 = vmul.f32 %v615, 0.1
        %v680 = vmul.f32 %v618, 0.1
        %v681 = vmul.f32 %v623, 0.1
        %v682 = vmul.f32 %v626, 0.1
        %v683 = vmul.f32 %v631, 0.1
        %v684 = vmul.f32 %v634, 0.1
        %v685 = vsel %vm637, %v543, %v661
        %v686 = vsel %vm638, %v546, %v662
        %v687 = vsel %vm639, %v551, %v663
        %v688 = vsel %vm640, %v554, %v664
        %v689 = vsel %vm641, %v559, %v665
        %v690 = vsel %vm642, %v562, %v666
        %v691 = vsel %vm643, %v567, %v667
        %v692 = vsel %vm644, %v570, %v668
        %v693 = vsel %vm645, %v575, %v669
        %v694 = vsel %vm646, %v578, %v670
        %v695 = vsel %vm647, %v583, %v671
        %v696 = vsel %vm648, %v586, %v672
        %v697 = vsel %vm649, %v591, %v673
        %v698 = vsel %vm650, %v594, %v674
        %v699 = vsel %vm651, %v599, %v675
        %v700 = vsel %vm652, %v602, %v676
        %v701 = vsel %vm653, %v607, %v677
        %v702 = vsel %vm654, %v610, %v678
        %v703 = vsel %vm655, %v615, %v679
        %v704 = vsel %vm656, %v618, %v680
        %v705 = vsel %vm657, %v623, %v681
        %v706 = vsel %vm658, %v626, %v682
        %v707 = vsel %vm659, %v631, %v683
        %v708 = vsel %vm660, %v634, %v684
        %v709 = vpack.c.bf16 %v686, %v685
        %v710 = vpack.c.bf16 %v688, %v687
        %v711 = vpack.c.bf16 %v690, %v689
        %v712 = vpack.c.bf16 %v692, %v691
        %v713 = vpack.c.bf16 %v694, %v693
        %v714 = vpack.c.bf16 %v696, %v695
        %v715 = vpack.c.bf16 %v698, %v697
        %v716 = vpack.c.bf16 %v700, %v699
        %v717 = vpack.c.bf16 %v702, %v701
        %v718 = vpack.c.bf16 %v704, %v703
        %v719 = vpack.c.bf16 %v706, %v705
        %v720 = vpack.c.bf16 %v708, %v707
        %v721 = vld [vmem:[%s1 + $0x8] sm:$0xf]
        %v722 = vld [vmem:[%s1 + $0xc] sm:$0xf]
        %v723 = vld [vmem:[%s1 + $0x10] sm:$0xf]
        %v724 = vld [vmem:[%s1 + $0x14] sm:$0xf]
        %v725 = vld [vmem:[%s2 + $0x1] sm:$0x1]
        %v726 = vlaneseq
        %v727 = vshrl.u32 %v726, 7
        %v728 = vsub.s32 0, %v727
        %v729 = vrot.slane %v725, %v728
        %v734 = vunpack.c.l.b16 %v721
        %v735 = vunpack.c.l.b16 %v722
        %v736 = vunpack.c.l.b16 %v723
        %v737 = vunpack.c.l.b16 %v724
        %v738 = vpack.c.b16 %v735, %v734
        %v739 = vpack.c.b16 %v737, %v736
        %vm742 = vcmask 261120
        %v744 = vsel %vm742, %v709, 0
        %v747 = vsel %vm742, %v710, 0
        %v750 = vsel %vm742, %v711, 0
        %v753 = vsel %vm742, %v712, 0
        %v756 = vsel %vm742, %v713, 0
        %v759 = vsel %vm742, %v714, 0
        %v762 = vsel %vm742, %v715, 0
        %v765 = vsel %vm742, %v716, 0
        %v768 = vsel %vm742, %v717, 0
        %v771 = vsel %vm742, %v718, 0
        %v774 = vsel %vm742, %v719, 0
        %v777 = vsel %vm742, %v720, 0
        %779 = vmatprep.subr.bf16.mxu0 0
        %780 = vmatpush1.bf16.msra.mxu0 %v738
        %781 = vmatprep.subr.bf16.mxu0 0
        %782 = vmatpush1.bf16.msra.mxu0 %v739
        %783 = vmatprep.subr.bf16.mxu0 0
        %784 = vmatpush1.bf16.msra.mxu0 0
        %785 = vmatprep.subr.bf16.mxu0 0
        %786 = vmatpush1.bf16.msra.mxu0 0
        %787 = vmatprep.subr.bf16.mxu0 0
        %788 = vmatpush1.bf16.msra.mxu0 0
        %789 = vmatprep.subr.bf16.mxu0 0
        %790 = vmatpush1.bf16.msra.mxu0 0
        %791 = vmatprep.subr.bf16.mxu0 0
        %792 = vmatpush1.bf16.msra.mxu0 0
        %793 = vmatprep.subr.bf16.mxu0 0
        %794 = vmatpush1.bf16.msra.mxu0 0
        %795 = vmatprep.subr.bf16.mxu0 0
        %796 = vmatpush1.bf16.msra.mxu0 0
        %797 = vmatprep.subr.bf16.mxu0 0
        %798 = vmatpush1.bf16.msra.mxu0 0
        %799 = vmatprep.subr.bf16.mxu0 0
        %800 = vmatpush1.bf16.msra.mxu0 0
        %801 = vmatprep.subr.bf16.mxu0 0
        %802 = vmatpush1.bf16.msra.mxu0 0
        %803 = vmatprep.subr.bf16.mxu0 0
        %804 = vmatpush1.bf16.msra.mxu0 0
        %805 = vmatprep.subr.bf16.mxu0 0
        %806 = vmatpush1.bf16.msra.mxu0 0
        %807 = vmatprep.subr.bf16.mxu0 0
        %808 = vmatpush1.bf16.msra.mxu0 0
        %809 = vmatprep.subr.bf16.mxu0 0
        %810 = vmatpush1.bf16.msra.mxu0 0
        %811 = vmatprep.mubr.bf16.mxu0 0
        %812 = vmatmul.mubr.bf16.gmra.mrb[0].mxu0 %v744
        %v813 = vpop.f32.mrb[0].mxu0
        %v814 = vadd.f32 %v729, %v813
        %v815 = vpop.f32.mrb[0].mxu0
        %v816 = vpop.f32.mrb[0].mxu0
        %v817 = vadd.f32 %v729, %v816
        %v818 = vpop.f32.mrb[0].mxu0
        %819 = vmatprep.mubr.bf16.mxu0 0
        %820 = vmatmul.mubr.bf16.gmra.mrb[0].mxu0 %v747
        %v821 = vpop.f32.mrb[0].mxu0
        %v822 = vadd.f32 %v729, %v821
        %v823 = vpop.f32.mrb[0].mxu0
        %v824 = vpop.f32.mrb[0].mxu0
        %v825 = vadd.f32 %v729, %v824
        %v826 = vpop.f32.mrb[0].mxu0
        %827 = vmatprep.mubr.bf16.mxu0 0
        %828 = vmatmul.mubr.bf16.gmra.mrb[0].mxu0 %v750
        %v829 = vpop.f32.mrb[0].mxu0
        %v830 = vadd.f32 %v729, %v829
        %v831 = vpop.f32.mrb[0].mxu0
        %v832 = vpop.f32.mrb[0].mxu0
        %v833 = vadd.f32 %v729, %v832
        %v834 = vpop.f32.mrb[0].mxu0
        %835 = vmatprep.mubr.bf16.mxu0 0
        %836 = vmatmul.mubr.bf16.gmra.mrb[0].mxu0 %v753
        %v837 = vpop.f32.mrb[0].mxu0
        %v838 = vadd.f32 %v729, %v837
        %v839 = vpop.f32.mrb[0].mxu0
        %v840 = vpop.f32.mrb[0].mxu0
        %v841 = vadd.f32 %v729, %v840
        %v842 = vpop.f32.mrb[0].mxu0
        %843 = vmatprep.mubr.bf16.mxu0 0
        %844 = vmatmul.mubr.bf16.gmra.mrb[0].mxu0 %v756
        %v845 = vpop.f32.mrb[0].mxu0
        %v846 = vadd.f32 %v729, %v845
        %v847 = vpop.f32.mrb[0].mxu0
        %v848 = vpop.f32.mrb[0].mxu0
        %v849 = vadd.f32 %v729, %v848
        %v850 = vpop.f32.mrb[0].mxu0
        %851 = vmatprep.mubr.bf16.mxu0 0
        %852 = vmatmul.mubr.bf16.gmra.mrb[0].mxu0 %v759
        %v853 = vpop.f32.mrb[0].mxu0
        %v854 = vadd.f32 %v729, %v853
        %v855 = vpop.f32.mrb[0].mxu0
        %v856 = vpop.f32.mrb[0].mxu0
        %v857 = vadd.f32 %v729, %v856
        %v858 = vpop.f32.mrb[0].mxu0
        %859 = vmatprep.mubr.bf16.mxu0 0
        %860 = vmatmul.mubr.bf16.gmra.mrb[0].mxu0 %v762
        %v861 = vpop.f32.mrb[0].mxu0
        %v862 = vadd.f32 %v729, %v861
        %v863 = vpop.f32.mrb[0].mxu0
        %v864 = vpop.f32.mrb[0].mxu0
        %v865 = vadd.f32 %v729, %v864
        %v866 = vpop.f32.mrb[0].mxu0
        %867 = vmatprep.mubr.bf16.mxu0 0
        %868 = vmatmul.mubr.bf16.gmra.mrb[0].mxu0 %v765
        %v869 = vpop.f32.mrb[0].mxu0
        %v870 = vadd.f32 %v729, %v869
        %v871 = vpop.f32.mrb[0].mxu0
        %v872 = vpop.f32.mrb[0].mxu0
        %v873 = vadd.f32 %v729, %v872
        %v874 = vpop.f32.mrb[0].mxu0
        %875 = vmatprep.mubr.bf16.mxu0 0
        %876 = vmatmul.mubr.bf16.gmra.mrb[0].mxu0 %v768
        %v877 = vpop.f32.mrb[0].mxu0
        %v878 = vadd.f32 %v729, %v877
        %v879 = vpop.f32.mrb[0].mxu0
        %v880 = vpop.f32.mrb[0].mxu0
        %v881 = vadd.f32 %v729, %v880
        %v882 = vpop.f32.mrb[0].mxu0
        %883 = vmatprep.mubr.bf16.mxu0 0
        %884 = vmatmul.mubr.bf16.gmra.mrb[0].mxu0 %v771
        %v885 = vpop.f32.mrb[0].mxu0
        %v886 = vadd.f32 %v729, %v885
        %v887 = vpop.f32.mrb[0].mxu0
        %v888 = vpop.f32.mrb[0].mxu0
        %v889 = vadd.f32 %v729, %v888
        %v890 = vpop.f32.mrb[0].mxu0
        %891 = vmatprep.mubr.bf16.mxu0 0
        %892 = vmatmul.mubr.bf16.gmra.mrb[0].mxu0 %v774
        %v893 = vpop.f32.mrb[0].mxu0
        %v894 = vadd.f32 %v729, %v893
        %v895 = vpop.f32.mrb[0].mxu0
        %v896 = vpop.f32.mrb[0].mxu0
        %v897 = vadd.f32 %v729, %v896
        %v898 = vpop.f32.mrb[0].mxu0
        %899 = vmatprep.mubr.bf16.mxu0 0
        %900 = vmatmul.mubr.bf16.gmra.mrb[0].mxu0 %v777
        %v901 = vpop.f32.mrb[0].mxu0
        %v902 = vadd.f32 %v729, %v901
        %v903 = vpop.f32.mrb[0].mxu0
        %v904 = vpop.f32.mrb[0].mxu0
        %v905 = vadd.f32 %v729, %v904
        %v906 = vpop.f32.mrb[0].mxu0
        %907 = vdwg.mxu0
        %vm908 = vcmp.gt.f32.partialorder %v814, 0.0
        %vm909 = vcmp.gt.f32.partialorder %v817, 0.0
        %vm910 = vcmp.gt.f32.partialorder %v822, 0.0
        %vm911 = vcmp.gt.f32.partialorder %v825, 0.0
        %vm912 = vcmp.gt.f32.partialorder %v830, 0.0
        %vm913 = vcmp.gt.f32.partialorder %v833, 0.0
        %vm914 = vcmp.gt.f32.partialorder %v838, 0.0
        %vm915 = vcmp.gt.f32.partialorder %v841, 0.0
        %vm916 = vcmp.gt.f32.partialorder %v846, 0.0
        %vm917 = vcmp.gt.f32.partialorder %v849, 0.0
        %vm918 = vcmp.gt.f32.partialorder %v854, 0.0
        %vm919 = vcmp.gt.f32.partialorder %v857, 0.0
        %vm920 = vcmp.gt.f32.partialorder %v862, 0.0
        %vm921 = vcmp.gt.f32.partialorder %v865, 0.0
        %vm922 = vcmp.gt.f32.partialorder %v870, 0.0
        %vm923 = vcmp.gt.f32.partialorder %v873, 0.0
        %vm924 = vcmp.gt.f32.partialorder %v878, 0.0
        %vm925 = vcmp.gt.f32.partialorder %v881, 0.0
        %vm926 = vcmp.gt.f32.partialorder %v886, 0.0
        %vm927 = vcmp.gt.f32.partialorder %v889, 0.0
        %vm928 = vcmp.gt.f32.partialorder %v894, 0.0
        %vm929 = vcmp.gt.f32.partialorder %v897, 0.0
        %vm930 = vcmp.gt.f32.partialorder %v902, 0.0
        %vm931 = vcmp.gt.f32.partialorder %v905, 0.0
        %v932 = vmul.f32 %v814, 0.1
        %v933 = vmul.f32 %v817, 0.1
        %v934 = vmul.f32 %v822, 0.1
        %v935 = vmul.f32 %v825, 0.1
        %v936 = vmul.f32 %v830, 0.1
        %v937 = vmul.f32 %v833, 0.1
        %v938 = vmul.f32 %v838, 0.1
        %v939 = vmul.f32 %v841, 0.1
        %v940 = vmul.f32 %v846, 0.1
        %v941 = vmul.f32 %v849, 0.1
        %v942 = vmul.f32 %v854, 0.1
        %v943 = vmul.f32 %v857, 0.1
        %v944 = vmul.f32 %v862, 0.1
        %v945 = vmul.f32 %v865, 0.1
        %v946 = vmul.f32 %v870, 0.1
        %v947 = vmul.f32 %v873, 0.1
        %v948 = vmul.f32 %v878, 0.1
        %v949 = vmul.f32 %v881, 0.1
        %v950 = vmul.f32 %v886, 0.1
        %v951 = vmul.f32 %v889, 0.1
        %v952 = vmul.f32 %v894, 0.1
        %v953 = vmul.f32 %v897, 0.1
        %v954 = vmul.f32 %v902, 0.1
        %v955 = vmul.f32 %v905, 0.1
        %v956 = vsel %vm908, %v814, %v932
        %v957 = vsel %vm909, %v817, %v933
        %v958 = vsel %vm910, %v822, %v934
        %v959 = vsel %vm911, %v825, %v935
        %v960 = vsel %vm912, %v830, %v936
        %v961 = vsel %vm913, %v833, %v937
        %v962 = vsel %vm914, %v838, %v938
        %v963 = vsel %vm915, %v841, %v939
        %v964 = vsel %vm916, %v846, %v940
        %v965 = vsel %vm917, %v849, %v941
        %v966 = vsel %vm918, %v854, %v942
        %v967 = vsel %vm919, %v857, %v943
        %v968 = vsel %vm920, %v862, %v944
        %v969 = vsel %vm921, %v865, %v945
        %v970 = vsel %vm922, %v870, %v946
        %v971 = vsel %vm923, %v873, %v947
        %v972 = vsel %vm924, %v878, %v948
        %v973 = vsel %vm925, %v881, %v949
        %v974 = vsel %vm926, %v886, %v950
        %v975 = vsel %vm927, %v889, %v951
        %v976 = vsel %vm928, %v894, %v952
        %v977 = vsel %vm929, %v897, %v953
        %v978 = vsel %vm930, %v902, %v954
        %v979 = vsel %vm931, %v905, %v955
        %981 = vset.pattern.permute.xlu0 7
        %982 = vperm.xlu0 %981, %v299
        %v983 = vpop.permute.xlu0 %982
        %986 = vset.pattern.permute.xlu0 7
        %987 = vperm.xlu0 %986, %v300
        %v988 = vpop.permute.xlu0 %987
        %991 = vset.pattern.permute.xlu0 7
        %992 = vperm.xlu0 %991, %v301
        %v993 = vpop.permute.xlu0 %992
        %996 = vset.pattern.permute.xlu0 7
        %997 = vperm.xlu0 %996, %v302
        %v998 = vpop.permute.xlu0 %997
        %1001 = vset.pattern.permute.xlu0 7
        %1002 = vperm.xlu0 %1001, %v303
        %v1003 = vpop.permute.xlu0 %1002
        %1006 = vset.pattern.permute.xlu0 7
        %1007 = vperm.xlu0 %1006, %v304
        %v1008 = vpop.permute.xlu0 %1007
        %1011 = vset.pattern.permute.xlu0 7
        %1012 = vperm.xlu0 %1011, %v305
        %v1013 = vpop.permute.xlu0 %1012
        %1016 = vset.pattern.permute.xlu0 7
        %1017 = vperm.xlu0 %1016, %v306
        %v1018 = vpop.permute.xlu0 %1017
        %1021 = vset.pattern.permute.xlu0 7
        %1022 = vperm.xlu0 %1021, %v307
        %v1023 = vpop.permute.xlu0 %1022
        %1026 = vset.pattern.permute.xlu0 7
        %1027 = vperm.xlu0 %1026, %v308
        %v1028 = vpop.permute.xlu0 %1027
        %1031 = vset.pattern.permute.xlu0 7
        %1032 = vperm.xlu0 %1031, %v309
        %v1033 = vpop.permute.xlu0 %1032
        %1036 = vset.pattern.permute.xlu0 7
        %1037 = vperm.xlu0 %1036, %v310
        %v1038 = vpop.permute.xlu0 %1037
        %1041 = vset.pattern.permute.xlu0 7
        %1042 = vperm.xlu0 %1041, %v311
        %v1043 = vpop.permute.xlu0 %1042
        %1046 = vset.pattern.permute.xlu0 7
        %1047 = vperm.xlu0 %1046, %v312
        %v1048 = vpop.permute.xlu0 %1047
        %1051 = vset.pattern.permute.xlu0 7
        %1052 = vperm.xlu0 %1051, %v313
        %v1053 = vpop.permute.xlu0 %1052
        %1056 = vset.pattern.permute.xlu0 7
        %1057 = vperm.xlu0 %1056, %v314
        %v1058 = vpop.permute.xlu0 %1057
        %1061 = vset.pattern.permute.xlu0 7
        %1062 = vperm.xlu0 %1061, %v315
        %v1063 = vpop.permute.xlu0 %1062
        %1066 = vset.pattern.permute.xlu0 7
        %1067 = vperm.xlu0 %1066, %v316
        %v1068 = vpop.permute.xlu0 %1067
        %1071 = vset.pattern.permute.xlu0 7
        %1072 = vperm.xlu0 %1071, %v317
        %v1073 = vpop.permute.xlu0 %1072
        %1076 = vset.pattern.permute.xlu0 7
        %1077 = vperm.xlu0 %1076, %v318
        %v1078 = vpop.permute.xlu0 %1077
        %1081 = vset.pattern.permute.xlu0 7
        %1082 = vperm.xlu0 %1081, %v319
        %v1083 = vpop.permute.xlu0 %1082
        %1086 = vset.pattern.permute.xlu0 7
        %1087 = vperm.xlu0 %1086, %v320
        %v1088 = vpop.permute.xlu0 %1087
        %1091 = vset.pattern.permute.xlu0 7
        %1092 = vperm.xlu0 %1091, %v321
        %v1093 = vpop.permute.xlu0 %1092
        %1096 = vset.pattern.permute.xlu0 7
        %1097 = vperm.xlu0 %1096, %v322
        %v1098 = vpop.permute.xlu0 %1097
        %v1100 = vmul.f32 %v956, %v983
        %v1101 = vmul.f32 %v957, %v988
        %v1102 = vmul.f32 %v958, %v993
        %v1103 = vmul.f32 %v959, %v998
        %v1104 = vmul.f32 %v960, %v1003
        %v1105 = vmul.f32 %v961, %v1008
        %v1106 = vmul.f32 %v962, %v1013
        %v1107 = vmul.f32 %v963, %v1018
        %v1108 = vmul.f32 %v964, %v1023
        %v1109 = vmul.f32 %v965, %v1028
        %v1110 = vmul.f32 %v966, %v1033
        %v1111 = vmul.f32 %v967, %v1038
        %v1112 = vmul.f32 %v968, %v1043
        %v1113 = vmul.f32 %v969, %v1048
        %v1114 = vmul.f32 %v970, %v1053
        %v1115 = vmul.f32 %v971, %v1058
        %v1116 = vmul.f32 %v972, %v1063
        %v1117 = vmul.f32 %v973, %v1068
        %v1118 = vmul.f32 %v974, %v1073
        %v1119 = vmul.f32 %v975, %v1078
        %v1120 = vmul.f32 %v976, %v1083
        %v1121 = vmul.f32 %v977, %v1088
        %v1122 = vmul.f32 %v978, %v1093
        %v1123 = vmul.f32 %v979, %v1098
        %vm1124 = vcmask 523264
        %v1125 = vsel %vm1124, %v1100, 0.0
        %v1126 = vsel %vm1124, %v1102, 0.0
        %v1127 = vadd.f32 %v1125, %v1126
        %v1128 = vsel %vm1124, %v1104, 0.0
        %v1129 = vadd.f32 %v1127, %v1128
        %v1130 = vsel %vm1124, %v1106, 0.0
        %v1131 = vadd.f32 %v1129, %v1130
        %v1132 = vsel %vm1124, %v1108, 0.0
        %v1133 = vadd.f32 %v1131, %v1132
        %v1134 = vsel %vm1124, %v1110, 0.0
        %v1135 = vadd.f32 %v1133, %v1134
        %v1136 = vsel %vm1124, %v1112, 0.0
        %v1137 = vadd.f32 %v1135, %v1136
        %v1138 = vsel %vm1124, %v1114, 0.0
        %v1139 = vadd.f32 %v1137, %v1138
        %v1140 = vsel %vm1124, %v1116, 0.0
        %v1141 = vadd.f32 %v1139, %v1140
        %v1142 = vsel %vm1124, %v1118, 0.0
        %v1143 = vadd.f32 %v1141, %v1142
        %v1144 = vsel %vm1124, %v1120, 0.0
        %v1145 = vadd.f32 %v1143, %v1144
        %v1146 = vsel %vm1124, %v1122, 0.0
        %v1147 = vadd.f32 %v1145, %v1146
        %v1148 = vsel %vm1124, %v1101, 0.0
        %v1149 = vsel %vm1124, %v1103, 0.0
        %v1150 = vadd.f32 %v1148, %v1149
        %v1151 = vsel %vm1124, %v1105, 0.0
        %v1152 = vadd.f32 %v1150, %v1151
        %v1153 = vsel %vm1124, %v1107, 0.0
        %v1154 = vadd.f32 %v1152, %v1153
        %v1155 = vsel %vm1124, %v1109, 0.0
        %v1156 = vadd.f32 %v1154, %v1155
        %v1157 = vsel %vm1124, %v1111, 0.0
        %v1158 = vadd.f32 %v1156, %v1157
        %v1159 = vsel %vm1124, %v1113, 0.0
        %v1160 = vadd.f32 %v1158, %v1159
        %v1161 = vsel %vm1124, %v1115, 0.0
        %v1162 = vadd.f32 %v1160, %v1161
        %v1163 = vsel %vm1124, %v1117, 0.0
        %v1164 = vadd.f32 %v1162, %v1163
        %v1165 = vsel %vm1124, %v1119, 0.0
        %v1166 = vadd.f32 %v1164, %v1165
        %v1167 = vsel %vm1124, %v1121, 0.0
        %v1168 = vadd.f32 %v1166, %v1167
        %v1169 = vsel %vm1124, %v1123, 0.0
        %v1170 = vadd.f32 %v1168, %v1169
        %v1171 = vpack.c.bf16 %v1170, %v1147
        %v1172 = vld [vmem:[%s1 + $0x18] sm:$0xf]
        %v1173 = vld [vmem:[%s1 + $0x1c] sm:$0xf]
        %v1174 = vld [vmem:[%s1 + $0x20] sm:$0xf]
        %v1175 = vld [vmem:[%s1 + $0x24] sm:$0xf]
        %v1176 = vld [vmem:[%s1 + $0x28] sm:$0xf]
        %v1177 = vld [vmem:[%s1 + $0x2c] sm:$0xf]
        %v1178 = vld [vmem:[%s1 + $0x30] sm:$0xf]
        %v1179 = vld [vmem:[%s1 + $0x34] sm:$0xf]
        %v1180 = vld [vmem:[%s2 + $0x2] sm:$0x1]
        %v1181 = vlaneseq
        %v1182 = vshrl.u32 %v1181, 7
        %v1183 = vsub.s32 0, %v1182
        %v1184 = vrot.slane %v1180, %v1183
        %v1193 = vunpack.c.l.b16 %v1172
        %v1194 = vunpack.c.l.b16 %v1173
        %v1195 = vunpack.c.l.b16 %v1174
        %v1196 = vunpack.c.l.b16 %v1175
        %v1197 = vunpack.c.l.b16 %v1176
        %v1198 = vunpack.c.l.b16 %v1177
        %v1199 = vunpack.c.l.b16 %v1178
        %v1200 = vunpack.c.l.b16 %v1179
        %v1201 = vpack.c.b16 %v1194, %v1193
        %v1202 = vpack.c.b16 %v1196, %v1195
        %v1203 = vpack.c.b16 %v1198, %v1197
        %v1204 = vpack.c.b16 %v1200, %v1199
        %v1210 = vsel %vm1124, %v1171, 0
        %1212 = vmatprep.subr.bf16.mxu0 0
        %1213 = vmatpush1.bf16.msra.mxu0 %v1201
        %1214 = vmatprep.subr.bf16.mxu0 0
        %1215 = vmatpush1.bf16.msra.mxu0 %v1202
        %1216 = vmatprep.subr.bf16.mxu0 0
        %1217 = vmatpush1.bf16.msra.mxu0 %v1203
        %1218 = vmatprep.subr.bf16.mxu0 0
        %1219 = vmatpush1.bf16.msra.mxu0 %v1204
        %1220 = vmatprep.subr.bf16.mxu0 0
        %1221 = vmatpush1.bf16.msra.mxu0 0
        %1222 = vmatprep.subr.bf16.mxu0 0
        %1223 = vmatpush1.bf16.msra.mxu0 0
        %1224 = vmatprep.subr.bf16.mxu0 0
        %1225 = vmatpush1.bf16.msra.mxu0 0
        %1226 = vmatprep.subr.bf16.mxu0 0
        %1227 = vmatpush1.bf16.msra.mxu0 0
        %1228 = vmatprep.subr.bf16.mxu0 0
        %1229 = vmatpush1.bf16.msra.mxu0 0
        %1230 = vmatprep.subr.bf16.mxu0 0
        %1231 = vmatpush1.bf16.msra.mxu0 0
        %1232 = vmatprep.subr.bf16.mxu0 0
        %1233 = vmatpush1.bf16.msra.mxu0 0
        %1234 = vmatprep.subr.bf16.mxu0 0
        %1235 = vmatpush1.bf16.msra.mxu0 0
        %1236 = vmatprep.subr.bf16.mxu0 0
        %1237 = vmatpush1.bf16.msra.mxu0 0
        %1238 = vmatprep.subr.bf16.mxu0 0
        %1239 = vmatpush1.bf16.msra.mxu0 0
        %1240 = vmatprep.subr.bf16.mxu0 0
        %1241 = vmatpush1.bf16.msra.mxu0 0
        %1242 = vmatprep.subr.bf16.mxu0 0
        %1243 = vmatpush1.bf16.msra.mxu0 0
        %1244 = vmatprep.mubr.bf16.mxu0 0
        %1245 = vmatmul.mubr.bf16.gmra.mrb[0].mxu0 %v1210
        %v1246 = vpop.f32.mrb[0].mxu0
        %v1247 = vadd.f32 %v1184, %v1246
        %v1248 = vpop.f32.mrb[0].mxu0
        %v1249 = vpop.f32.mrb[0].mxu0
        %v1250 = vadd.f32 %v1184, %v1249
        %v1251 = vpop.f32.mrb[0].mxu0
        %1252 = vdwg.mxu0
        %vm1253 = vcmp.gt.f32.partialorder %v1247, 0.0
        %vm1254 = vcmp.gt.f32.partialorder %v1250, 0.0
        %v1255 = vmul.f32 %v1247, 0.1
        %v1256 = vmul.f32 %v1250, 0.1
        %v1257 = vsel %vm1253, %v1247, %v1255
        %v1258 = vsel %vm1254, %v1250, %v1256
        %v1259 = vpack.c.bf16 %v1258, %v1257
        %v1260 = vld [vmem:[%s1 + $0x38] sm:$0xf]
        %v1261 = vld [vmem:[%s1 + $0x3c] sm:$0xf]
        %v1262 = vld [vmem:[%s1 + $0x40] sm:$0xf]
        %v1263 = vld [vmem:[%s1 + $0x44] sm:$0xf]
        %v1264 = vld [vmem:[%s1 + $0x48] sm:$0xf]
        %v1265 = vld [vmem:[%s1 + $0x4c] sm:$0xf]
        %v1266 = vld [vmem:[%s1 + $0x50] sm:$0xf]
        %v1267 = vld [vmem:[%s1 + $0x54] sm:$0xf]
        %v1268 = vld [vmem:[%s2 + $0x3] sm:$0x1]
        %v1269 = vlaneseq
        %v1270 = vshrl.u32 %v1269, 7
        %v1271 = vsub.s32 0, %v1270
        %v1272 = vrot.slane %v1268, %v1271
        %v1281 = vunpack.c.l.b16 %v1260
        %v1282 = vunpack.c.l.b16 %v1261
        %v1283 = vunpack.c.l.b16 %v1262
        %v1284 = vunpack.c.l.b16 %v1263
        %v1285 = vunpack.c.l.b16 %v1264
        %v1286 = vunpack.c.l.b16 %v1265
        %v1287 = vunpack.c.l.b16 %v1266
        %v1288 = vunpack.c.l.b16 %v1267
        %v1289 = vpack.c.b16 %v1282, %v1281
        %v1290 = vpack.c.b16 %v1284, %v1283
        %v1291 = vpack.c.b16 %v1286, %v1285
        %v1292 = vpack.c.b16 %v1288, %v1287
        %v1298 = vsel %vm1124, %v1259, 0
        %1300 = vmatprep.subr.bf16.mxu0 0
        %1301 = vmatpush1.bf16.msra.mxu0 %v1289
        %1302 = vmatprep.subr.bf16.mxu0 0
        %1303 = vmatpush1.bf16.msra.mxu0 %v1290
        %1304 = vmatprep.subr.bf16.mxu0 0
        %1305 = vmatpush1.bf16.msra.mxu0 %v1291
        %1306 = vmatprep.subr.bf16.mxu0 0
        %1307 = vmatpush1.bf16.msra.mxu0 %v1292
        %1308 = vmatprep.subr.bf16.mxu0 0
        %1309 = vmatpush1.bf16.msra.mxu0 0
        %1310 = vmatprep.subr.bf16.mxu0 0
        %1311 = vmatpush1.bf16.msra.mxu0 0
        %1312 = vmatprep.subr.bf16.mxu0 0
        %1313 = vmatpush1.bf16.msra.mxu0 0
        %1314 = vmatprep.subr.bf16.mxu0 0
        %1315 = vmatpush1.bf16.msra.mxu0 0
        %1316 = vmatprep.subr.bf16.mxu0 0
        %1317 = vmatpush1.bf16.msra.mxu0 0
        %1318 = vmatprep.subr.bf16.mxu0 0
        %1319 = vmatpush1.bf16.msra.mxu0 0
        %1320 = vmatprep.subr.bf16.mxu0 0
        %1321 = vmatpush1.bf16.msra.mxu0 0
        %1322 = vmatprep.subr.bf16.mxu0 0
        %1323 = vmatpush1.bf16.msra.mxu0 0
        %1324 = vmatprep.subr.bf16.mxu0 0
        %1325 = vmatpush1.bf16.msra.mxu0 0
        %1326 = vmatprep.subr.bf16.mxu0 0
        %1327 = vmatpush1.bf16.msra.mxu0 0
        %1328 = vmatprep.subr.bf16.mxu0 0
        %1329 = vmatpush1.bf16.msra.mxu0 0
        %1330 = vmatprep.subr.bf16.mxu0 0
        %1331 = vmatpush1.bf16.msra.mxu0 0
        %1332 = vmatprep.mubr.bf16.mxu0 0
        %1333 = vmatmul.mubr.bf16.gmra.mrb[0].mxu0 %v1298
        %v1334 = vpop.f32.mrb[0].mxu0
        %v1335 = vadd.f32 %v1272, %v1334
        %v1336 = vpop.f32.mrb[0].mxu0
        %v1337 = vpop.f32.mrb[0].mxu0
        %v1338 = vadd.f32 %v1272, %v1337
        %v1339 = vpop.f32.mrb[0].mxu0
        %1340 = vdwg.mxu0
        %vm1341 = vcmp.gt.f32.partialorder %v1335, 0.0
        %vm1342 = vcmp.gt.f32.partialorder %v1338, 0.0
        %v1343 = vmul.f32 %v1335, 0.1
        %v1344 = vmul.f32 %v1338, 0.1
        %v1345 = vsel %vm1341, %v1335, %v1343
        %v1346 = vsel %vm1342, %v1338, %v1344
        %v1347 = vpack.c.bf16 %v1346, %v1345
        %v1348 = vld [vmem:[%s1 + $0x58] sm:$0xf]
        %v1349 = vld [vmem:[%s1 + $0x5c] sm:$0xf]
        %v1350 = vld [vmem:[%s1 + $0x60] sm:$0xf]
        %v1351 = vld [vmem:[%s1 + $0x64] sm:$0xf]
        %v1352 = vld [vmem:[%s2 + $0x4] sm:$0x1]
        %v1353 = vlaneseq
        %v1354 = vshrl.u32 %v1353, 7
        %v1355 = vsub.s32 0, %v1354
        %v1356 = vrot.slane %v1352, %v1355
        %v1361 = vunpack.c.l.b16 %v1348
        %v1362 = vunpack.c.l.b16 %v1349
        %v1363 = vunpack.c.l.b16 %v1350
        %v1364 = vunpack.c.l.b16 %v1351
        %v1365 = vpack.c.b16 %v1362, %v1361
        %v1366 = vpack.c.b16 %v1364, %v1363
        %v1370 = vsel %vm742, %v1347, 0
        %1372 = vmatprep.subr.bf16.mxu0 0
        %1373 = vmatpush1.bf16.msra.mxu0 %v1365
        %1374 = vmatprep.subr.bf16.mxu0 0
        %1375 = vmatpush1.bf16.msra.mxu0 %v1366
        %1376 = vmatprep.subr.bf16.mxu0 0
        %1377 = vmatpush1.bf16.msra.mxu0 0
        %1378 = vmatprep.subr.bf16.mxu0 0
        %1379 = vmatpush1.bf16.msra.mxu0 0
        %1380 = vmatprep.subr.bf16.mxu0 0
        %1381 = vmatpush1.bf16.msra.mxu0 0
        %1382 = vmatprep.subr.bf16.mxu0 0
        %1383 = vmatpush1.bf16.msra.mxu0 0
        %1384 = vmatprep.subr.bf16.mxu0 0
        %1385 = vmatpush1.bf16.msra.mxu0 0
        %1386 = vmatprep.subr.bf16.mxu0 0
        %1387 = vmatpush1.bf16.msra.mxu0 0
        %1388 = vmatprep.subr.bf16.mxu0 0
        %1389 = vmatpush1.bf16.msra.mxu0 0
        %1390 = vmatprep.subr.bf16.mxu0 0
        %1391 = vmatpush1.bf16.msra.mxu0 0
        %1392 = vmatprep.subr.bf16.mxu0 0
        %1393 = vmatpush1.bf16.msra.mxu0 0
        %1394 = vmatprep.subr.bf16.mxu0 0
        %1395 = vmatpush1.bf16.msra.mxu0 0
        %1396 = vmatprep.subr.bf16.mxu0 0
        %1397 = vmatpush1.bf16.msra.mxu0 0
        %1398 = vmatprep.subr.bf16.mxu0 0
        %1399 = vmatpush1.bf16.msra.mxu0 0
        %1400 = vmatprep.subr.bf16.mxu0 0
        %1401 = vmatpush1.bf16.msra.mxu0 0
        %1402 = vmatprep.subr.bf16.mxu0 0
        %1403 = vmatpush1.bf16.msra.mxu0 0
        %1404 = vmatprep.mubr.bf16.mxu0 0
        %1405 = vmatmul.mubr.bf16.gmra.mrb[0].mxu0 %v1370
        %v1406 = vpop.f32.mrb[0].mxu0
        %v1407 = vadd.f32 %v1356, %v1406
        %v1408 = vpop.f32.mrb[0].mxu0
        %v1409 = vpop.f32.mrb[0].mxu0
        %v1410 = vadd.f32 %v1356, %v1409
        %v1411 = vpop.f32.mrb[0].mxu0
        %1412 = vdwg.mxu0
        %1413 = vmax.xlane.f32.xlu0 %v1407
        %v1414 = vpop.xlane.xlu0 %1413
        %1415 = vmax.xlane.f32.xlu0 %v1410
        %v1416 = vpop.xlane.xlu0 %1415
        %v1417 = vsub.f32 %v1407, %v1414
        %v1418 = vsub.f32 %v1410, %v1416
        %v1419 = vmul.f32 %v1417, 1.442695
        %v1420 = vpow.pop %v1419
        %v1421 = vmul.f32 %v1418, 1.442695
        %v1422 = vpow.pop %v1421
        %1423 = vadd.xlane.f32.xlu0 %v1420
        %v1424 = vpop.xlane.xlu0 %1423
        %1425 = vadd.xlane.f32.xlu0 %v1422
        %v1426 = vpop.xlane.xlu0 %1425
        %v1427 = vrcp.pop %v1424
        %v1428 = vrcp.pop %v1426
        %v1429 = vmul.f32 %v1420, %v1427
        %v1430 = vmul.f32 %v1422, %v1428
        %v1431 = vpack.c.bf16 %v1430, %v1429
        %v1433 = vunpack.c.l.b16 %v1431
        %v1434 = vunpack.c.h.b16 %v1431
        %v1435 = vpack.c.b16 %v1433, %v1433
        %v1436 = vpack.c.b16 %v1434, %v1434
        %1439 = vst [vmem:[%s295] sm:$0xf] %v1435
        %1440 = vst [vmem:[%s295 + $0x4] sm:$0xf] %v1436
        %s1441 = sand.u32 %s93, 1
        %s1442 = scalar_lea.sflag [#allocation4], %s1441
        %s1443 = sand.u32 %s93, 1
        %s1444 = smul.addr %s1443, 8
        %s1445 = scalar_lea.vmem [#allocation3], %s1444
        // Predicated region
        $region71: #{tpu_custom_call.1} parent=65 // pred_check
          %p1446 = pneg %p103
        $region72: #{tpu_custom_call.1} parent=65 // pred_check_branch
          %1448 = sbr.rel (%p1446) target = $region74
        $region73: #{tpu_custom_call.1} parent=65 // pred_region
          %s1449 = smul.u32 2, %s17
          %s1451 = ssub.s32 128, 128
          %1452 = vsyncadd %s1442, %s1451
          %s1453 = smul.addr %s1449, 64
          %s1454 = scalar_lea.hbm %s3, %s1453
          %s1455 = sshll.u32 %s1445, 4
          %s1456 = int_to_ptr.vmem [resolvable:$true] %s1455
          %1461 = dma.vmem_to_hbm [thread:$0]  %s1456, 128, %s1454, %s1442, 64, 64, 4
        $region74: #{tpu_custom_call.1} parent=65 // pred_fallthru
          _
      $region66: #{tpu_custom_call.1} parent=5 // pred_fallthru
        _
      %p1462 = scmp.le.s32.totalorder 2, %s12
      // Predicated region
      $region75: #{tpu_custom_call.1} parent=5 // pred_check
        %p1463 = pneg %p1462
      $region76: #{tpu_custom_call.1} parent=5 // pred_check_branch
        %1465 = sbr.rel (%p1463) target = $region78
      $region77: #{tpu_custom_call.1} parent=5 // pred_region
        %s1466 = ssub.s32 %s12, 2
        // Predicated region
        $region79: #{tpu_custom_call.1} parent=77 // pred_check
          %p1467 = pneg %p109
        $region80: #{tpu_custom_call.1} parent=77 // pred_check_branch
          %1469 = sbr.rel (%p1467) target = $region82
        $region81: #{tpu_custom_call.1} parent=77 // pred_region
          %s1470 = sand.u32 %s94, 1
          %s1471 = scalar_lea.sflag [#allocation4], %s1470
          %s1472 = sand.u32 %s94, 1
          %s1473 = smul.addr %s1472, 8
          %s1474 = scalar_lea.vmem [#allocation3], %s1473
          %1475 = dma.done %s1471, 128
        $region82: #{tpu_custom_call.1} parent=77 // pred_fallthru
          _
      $region78: #{tpu_custom_call.1} parent=5 // pred_fallthru
        _
    $region6: #{tpu_custom_call.1} parent=1 // loop_footer
      %s16 = sadd.s32 1, %s12
    $region7: #{tpu_custom_call.1} parent=1 // loop_footer_branch
      %11 = sbr.rel target = $region3
    $region8: #{tpu_custom_call.1} parent=1 // loop_exit
      _
    %1476 = vsyncpa [#allocation4], 1
    %s1477 = scalar_lea.sflag [#allocation4], 1
    %1478 = vsyncpa %s1477, 1

</llo_original>
